<compile_context>
chip_gen: v7x
topology: tpu7x:2x2x1
jax: 0.10.0
libtpu: 0.0.40
codegen_flags: <defaults>
</compile_context>

<pallas_src>
import functools
import math

import jax
import jax.numpy as jnp
from jax.experimental import pallas as pl
from jax.experimental.pallas import tpu as pltpu


def _layer_norm(x, gamma, beta, eps=1e-5):
    # Single-pass statistics: E[x], E[x^2]; biased variance (PyTorch LayerNorm).
    mean = jnp.mean(x, axis=-1, keepdims=True)
    mean_sq = jnp.mean(x * x, axis=-1, keepdims=True)
    var = jnp.maximum(mean_sq - mean * mean, 0.0)
    return (x - mean) * jax.lax.rsqrt(var + eps) * gamma + beta


def cross_transformer_kernel(
    q_ref, kv_ref,
    lnq1_g_ref, lnq1_b_ref,
    lnkv_g_ref, lnkv_b_ref,
    wq_t_ref, wk_t_ref, wv_t_ref,   # (D, D) bf16, pre-transposed; scale folded into wq
    w_out_t_ref,                    # (D, D) bf16, pre-transposed out-projection
    lnq2_g_ref, lnq2_b_ref,
    w_lin2_t_ref,                   # (D, D) bf16, pre-transposed linear2
    o_ref,
    *, heads, head_dim, bt, lq, lkv,
):
    q_in = q_ref[...]               # (bt*lq, D) f32
    kv_in = kv_ref[...]             # (bt*lkv, D) f32

    # --- pre-attention LayerNorms (f32 statistics, single pass) ---
    q_ln = _layer_norm(q_in, lnq1_g_ref[...], lnq1_b_ref[...]).astype(jnp.bfloat16)
    kv_ln = _layer_norm(kv_in, lnkv_g_ref[...], lnkv_b_ref[...]).astype(jnp.bfloat16)

    # --- wide in-projections: MXU N = D (full systolic-array fill), f32 accum ---
    qp = jnp.dot(q_ln, wq_t_ref[...],
                 preferred_element_type=jnp.float32).astype(jnp.bfloat16)   # (bt*lq, D)
    kp = jnp.dot(kv_ln, wk_t_ref[...],
                 preferred_element_type=jnp.float32).astype(jnp.bfloat16)   # (bt*lkv, D)
    vp = jnp.dot(kv_ln, wv_t_ref[...],
                 preferred_element_type=jnp.float32).astype(jnp.bfloat16)   # (bt*lkv, D)

    # --- head split: lane-block slice per head + row split into (bt, l, hd);
    #     batch and head collapse onto one leading batch axis g = h*bt + b so
    #     attention runs as ONE batched MXU stream (no per-batch Python loop). ---
    def split_heads(x, l):
        return jnp.concatenate(
            [x[:, h * head_dim:(h + 1) * head_dim].reshape(bt, l, head_dim)
             for h in range(heads)],
            axis=0)                                   # (heads*bt, l, hd)

    qh = split_heads(qp, lq)
    kh = split_heads(kp, lkv)
    vh = split_heads(vp, lkv)

    # --- scaled dot-product attention (scale already folded into the Q weight) ---
    s = jnp.einsum('gqd,gkd->gqk', qh, kh,
                   preferred_element_type=jnp.float32)        # (heads*bt, lq, lkv)
    m = jnp.max(s, axis=-1, keepdims=True)
    e = jnp.exp(s - m)
    p = e * pl.reciprocal(jnp.sum(e, axis=-1, keepdims=True), approx=True)
    ctx = jnp.einsum('gqk,gkd->gqd', p.astype(jnp.bfloat16), vh,
                     preferred_element_type=jnp.float32).astype(jnp.bfloat16)

    # --- merge heads back onto the lane axis -> (bt*lq, D), PyTorch concat order ---
    ctx2d = jnp.concatenate(
        [ctx[h * bt:(h + 1) * bt].reshape(bt * lq, head_dim) for h in range(heads)],
        axis=-1)

    # --- output projection: single full-K matmul (head reduction in MXU f32 acc) ---
    attn_out = jnp.dot(ctx2d, w_out_t_ref[...], preferred_element_type=jnp.float32)

    # --- residual 1, second LayerNorm, SiLU ---
    q_mid = attn_out + q_in
    q2 = _layer_norm(q_mid, lnq2_g_ref[...], lnq2_b_ref[...])
    q2 = q2 * jax.nn.sigmoid(q2)
    # TODO(synk): training-mode dropout (PRNG mask) not implemented; eval identity.

    # --- linear2 (bias=False, weight pre-transposed in wrapper) + residual 2 ---
    q3 = jnp.dot(q2.astype(jnp.bfloat16), w_lin2_t_ref[...],
                 preferred_element_type=jnp.float32)
    o_ref[...] = (q3 + q_mid).astype(o_ref.dtype)


def _pick_batch_tile(B, Lq, Lkv, target_rows=512):
    """How many batch elements to pack per grid step (bt*Lq rows -> MXU M)."""
    def ok(bt):
        if bt < 1 or B % bt != 0:
            return False
        if bt == B:
            return True            # block == full array extent is always legal
        return (bt * Lq) % 8 == 0 and (bt * Lkv) % 8 == 0

    bt = max(1, min(B, max(1, target_rows // max(Lq, 1))))
    # Keep >= 2 grid steps when B > 1: a "parallel" grid axis then spans both
    # v7x TensorCores and the software pipeline has something to overlap.
    if B > 1:
        bt = min(bt, max(1, B // 2))
    while bt > 1 and not ok(bt):
        bt -= 1
    if not ok(bt):
        bt = B
    return bt


def _vmem_limit_bytes(bt, lq, lkv, D, heads):
    """Rough VMEM budget from actual buffer sizes, clamped to <=64 MiB (v7x)."""
    rq, rk = bt * lq, bt * lkv
    io = 2 * 4 * (2 * rq * D + rk * D)                  # double-buffered f32 q/out + kv blocks
    wgt = 2 * (5 * D * D * 2 + 6 * D * 4)               # double-buffered bf16 weights + LN vecs
    inter = 4 * 3 * (rq + rk) * D                       # LN'd acts, projections, residuals
    inter += 4 * heads * bt * lq * lkv                  # f32 score block
    inter += 2 * heads * bt * (lq + 2 * lkv) * (D // heads)   # bf16 per-head stacks
    est = io + wgt + inter
    return int(min(64 * 1024 * 1024, max(32 * 1024 * 1024, 2 * est)))


def cross_transformer(q_input, kv, params, *, d_model, heads, block_batch=None):
    """q_input: (B, Lq, D), kv: (B, Lkv, D). Returns (B, Lq, D). Eval mode."""
    B, Lq, D = q_input.shape
    _, Lkv, _ = kv.shape
    assert D == d_model and D % heads == 0
    hd = D // heads

    bt = block_batch if block_batch is not None else _pick_batch_tile(B, Lq, Lkv)
    assert B % bt == 0

    # Wrapper-side layout plumbing (once, outside the kernel):
    #  - flatten (B, L, D) -> (B*L, D) row slabs,
    #  - pre-transpose all weights so every in-kernel matmul is x @ W_t,
    #  - fold the 1/sqrt(head_dim) attention scale into the f32 Q weight,
    #  - cast weights to bf16 (halves HBM->VMEM weight traffic).
    q2d = q_input.reshape(B * Lq, D)
    kv2d = kv.reshape(B * Lkv, D)

    scale = 1.0 / math.sqrt(hd)
    w_in = params["w_in"].astype(jnp.float32)
    wq_t = (w_in[0:D] * scale).T.astype(jnp.bfloat16)          # (D, D)
    wk_t = w_in[D:2 * D].T.astype(jnp.bfloat16)                # (D, D)
    wv_t = w_in[2 * D:3 * D].T.astype(jnp.bfloat16)            # (D, D)
    w_out_t = params["w_out"].astype(jnp.float32).T.astype(jnp.bfloat16)    # (D, D)
    w_lin2_t = params["w_lin2"].astype(jnp.float32).T.astype(jnp.bfloat16)  # (D, D)

    kern = functools.partial(cross_transformer_kernel, heads=heads, head_dim=hd,
                             bt=bt, lq=Lq, lkv=Lkv)

    vec_spec = pl.BlockSpec((1, D), lambda i: (0, 0))
    mat_spec = pl.BlockSpec((D, D), lambda i: (0, 0))

    out2d = pl.pallas_call(
        kern,
        out_shape=jax.ShapeDtypeStruct((B * Lq, D), q_input.dtype),
        grid_spec=pltpu.PrefetchScalarGridSpec(
            num_scalar_prefetch=0,
            grid=(B // bt,),
            in_specs=[
                pl.BlockSpec((bt * Lq, D), lambda i: (i, 0)),    # q rows
                pl.BlockSpec((bt * Lkv, D), lambda i: (i, 0)),   # kv rows
                vec_spec, vec_spec,                              # ln_q1 gamma/beta
                vec_spec, vec_spec,                              # ln_kv gamma/beta
                mat_spec, mat_spec, mat_spec,                    # wq_t, wk_t, wv_t
                mat_spec,                                        # w_out_t
                vec_spec, vec_spec,                              # ln_q2 gamma/beta
                mat_spec,                                        # w_lin2_t
            ],
            out_specs=pl.BlockSpec((bt * Lq, D), lambda i: (i, 0)),
        ),
        compiler_params=pltpu.CompilerParams(
            dimension_semantics=("parallel",),
            vmem_limit_bytes=_vmem_limit_bytes(bt, Lq, Lkv, D, heads),
        ),
    )(
        q2d, kv2d,
        params["lnq1_g"], params["lnq1_b"],
        params["lnkv_g"], params["lnkv_b"],
        wq_t, wk_t, wv_t, w_out_t,
        params["lnq2_g"], params["lnq2_b"],
        w_lin2_t,
    )
    return out2d.reshape(B, Lq, D)


def cross_transformer_ref(q_input, kv, params, *, d_model, heads):
    """Pure-JAX f32 reference (eval mode) for correctness checking."""
    def ln(x, g, b, eps=1e-5):
        mean = jnp.mean(x, axis=-1, keepdims=True)
        var = jnp.mean((x - mean) ** 2, axis=-1, keepdims=True)
        return (x - mean) / jnp.sqrt(var + eps) * g + b

    hd = d_model // heads
    q = ln(q_input, params["lnq1_g"], params["lnq1_b"])
    k = ln(kv, params["lnkv_g"], params["lnkv_b"])
    w_in = params["w_in"]
    wq, wk, wv = w_in[:d_model], w_in[d_model:2 * d_model], w_in[2 * d_model:]
    Q = q @ wq.T
    K = k @ wk.T
    V = k @ wv.T
    B, Lq, _ = Q.shape
    Lkv = K.shape[1]
    Qh = Q.reshape(B, Lq, heads, hd).transpose(0, 2, 1, 3)
    Kh = K.reshape(B, Lkv, heads, hd).transpose(0, 2, 1, 3)
    Vh = V.reshape(B, Lkv, heads, hd).transpose(0, 2, 1, 3)
    s = jnp.einsum("bhqd,bhkd->bhqk", Qh, Kh) / math.sqrt(hd)
    p = jax.nn.softmax(s, axis=-1)
    o = jnp.einsum("bhqk,bhkd->bhqd", p, Vh).transpose(0, 2, 1, 3).reshape(B, Lq, d_model)
    attn_out = o @ params["w_out"].T
    q_mid = attn_out + q_input
    q2 = ln(q_mid, params["lnq2_g"], params["lnq2_b"])
    q2 = jax.nn.silu(q2)
    return q2 @ params["w_lin2"].T + q_mid


if __name__ == "__main__":
    B, Lq, Lkv = 2, 8, 8
    d_model, heads = 32, 4

    key = jax.random.PRNGKey(0)
    keys = jax.random.split(key, 8)

    q_input = jax.random.normal(keys[0], (B, Lq, d_model), dtype=jnp.float32)
    kv = jax.random.normal(keys[1], (B, Lkv, d_model), dtype=jnp.float32)

    s = 1.0 / math.sqrt(d_model)
    params = {
        "lnq1_g": 1.0 + 0.1 * jax.random.normal(keys[2], (1, d_model), jnp.float32),
        "lnq1_b": 0.1 * jax.random.normal(keys[3], (1, d_model), jnp.float32),
        "lnkv_g": 1.0 + 0.1 * jax.random.normal(keys[4], (1, d_model), jnp.float32),
        "lnkv_b": 0.1 * jax.random.normal(keys[5], (1, d_model), jnp.float32),
        "lnq2_g": jnp.ones((1, d_model), jnp.float32),
        "lnq2_b": jnp.zeros((1, d_model), jnp.float32),
        # MultiheadAttention(bias=False): in_proj (3D, D), out_proj (D, D)
        "w_in": s * jax.random.normal(keys[6], (3 * d_model, d_model), jnp.float32),
        "w_out": s * jax.random.normal(keys[7], (d_model, d_model), jnp.float32),
        # linear2 (bias=False)
        "w_lin2": s * jax.random.normal(jax.random.PRNGKey(42),
                                        (d_model, d_model), jnp.float32),
    }

    out = cross_transformer(q_input, kv, params, d_model=d_model, heads=heads)
    out = jax.block_until_ready(out)

    ref = cross_transformer_ref(q_input, kv, params, d_model=d_model, heads=heads)
    assert out.shape == (B, Lq, d_model)
    max_err = jnp.max(jnp.abs(out - ref))
    # bf16 matmul operands (f32 accumulation) => ~1e-2 level deviation vs f32 ref.
    assert jnp.allclose(out, ref, atol=1e-1, rtol=1e-1), f"max abs err {max_err}"

    print("KERNEL_OK")
</pallas_src>

<mosaic_0001>
module attributes {stable_mosaic.version = 11 : i64} {
  func.func @cross_transformer_kernel(%arg0: i32, %arg1: memref<8x32xf32, #tpu.memory_space<vmem>>, %arg2: memref<8x32xf32, #tpu.memory_space<vmem>>, %arg3: memref<1x32xf32, #tpu.memory_space<vmem>>, %arg4: memref<1x32xf32, #tpu.memory_space<vmem>>, %arg5: memref<1x32xf32, #tpu.memory_space<vmem>>, %arg6: memref<1x32xf32, #tpu.memory_space<vmem>>, %arg7: memref<32x32xbf16, #tpu.memory_space<vmem>>, %arg8: memref<32x32xbf16, #tpu.memory_space<vmem>>, %arg9: memref<32x32xbf16, #tpu.memory_space<vmem>>, %arg10: memref<32x32xbf16, #tpu.memory_space<vmem>>, %arg11: memref<1x32xf32, #tpu.memory_space<vmem>>, %arg12: memref<1x32xf32, #tpu.memory_space<vmem>>, %arg13: memref<32x32xbf16, #tpu.memory_space<vmem>>, %arg14: memref<8x32xf32, #tpu.memory_space<vmem>>) attributes {dimension_semantics = [#tpu.dimension_semantics<parallel>], iteration_bounds = array<i64: 2>, scalar_prefetch = 0 : i64, scratch_operands = 0 : i64, tpu.core_type = #tpu.core_type<tc>, window_params = [{transform_indices = @transform_0, window_bounds = array<i64: 8, 32>}, {transform_indices = @transform_1, window_bounds = array<i64: 8, 32>}, {pipeline_mode = #tpu.pipeline_mode<synchronous>, transform_indices = @transform_2, window_bounds = array<i64: 1, 32>}, {pipeline_mode = #tpu.pipeline_mode<synchronous>, transform_indices = @transform_3, window_bounds = array<i64: 1, 32>}, {pipeline_mode = #tpu.pipeline_mode<synchronous>, transform_indices = @transform_4, window_bounds = array<i64: 1, 32>}, {pipeline_mode = #tpu.pipeline_mode<synchronous>, transform_indices = @transform_5, window_bounds = array<i64: 1, 32>}, {pipeline_mode = #tpu.pipeline_mode<synchronous>, transform_indices = @transform_6, window_bounds = array<i64: 32, 32>}, {pipeline_mode = #tpu.pipeline_mode<synchronous>, transform_indices = @transform_7, window_bounds = array<i64: 32, 32>}, {pipeline_mode = #tpu.pipeline_mode<synchronous>, transform_indices = @transform_8, window_bounds = array<i64: 32, 32>}, {pipeline_mode = #tpu.pipeline_mode<synchronous>, transform_indices = @transform_9, window_bounds = array<i64: 32, 32>}, {pipeline_mode = #tpu.pipeline_mode<synchronous>, transform_indices = @transform_10, window_bounds = array<i64: 1, 32>}, {pipeline_mode = #tpu.pipeline_mode<synchronous>, transform_indices = @transform_11, window_bounds = array<i64: 1, 32>}, {pipeline_mode = #tpu.pipeline_mode<synchronous>, transform_indices = @transform_12, window_bounds = array<i64: 32, 32>}, {transform_indices = @transform_13, window_bounds = array<i64: 8, 32>}]} {
    %c0 = arith.constant 0 : index
    %c0_0 = arith.constant 0 : index
    %0 = vector.load %arg1[%c0, %c0_0] : memref<8x32xf32, #tpu.memory_space<vmem>>, vector<8x32xf32>
    %c0_1 = arith.constant 0 : index
    %c0_2 = arith.constant 0 : index
    %1 = vector.load %arg2[%c0_1, %c0_2] : memref<8x32xf32, #tpu.memory_space<vmem>>, vector<8x32xf32>
    %c0_3 = arith.constant 0 : index
    %c0_4 = arith.constant 0 : index
    %2 = vector.load %arg3[%c0_3, %c0_4] : memref<1x32xf32, #tpu.memory_space<vmem>>, vector<1x32xf32>
    %c0_5 = arith.constant 0 : index
    %c0_6 = arith.constant 0 : index
    %3 = vector.load %arg4[%c0_5, %c0_6] : memref<1x32xf32, #tpu.memory_space<vmem>>, vector<1x32xf32>
    %cst = arith.constant dense<0.000000e+00> : vector<8xf32>
    %4 = vector.multi_reduction <add>, %0, %cst [1] : vector<8x32xf32> to vector<8xf32>
    %5 = vector.shape_cast %4 : vector<8xf32> to vector<8x1xf32>
    %cst_7 = arith.constant 3.200000e+01 : f32
    %6 = vector.broadcast %cst_7 : f32 to vector<8x1xf32>
    %7 = arith.divf %5, %6 : vector<8x1xf32>
    %8 = arith.mulf %0, %0 : vector<8x32xf32>
    %cst_8 = arith.constant dense<0.000000e+00> : vector<8xf32>
    %9 = vector.multi_reduction <add>, %8, %cst_8 [1] : vector<8x32xf32> to vector<8xf32>
    %10 = vector.shape_cast %9 : vector<8xf32> to vector<8x1xf32>
    %cst_9 = arith.constant 3.200000e+01 : f32
    %11 = vector.broadcast %cst_9 : f32 to vector<8x1xf32>
    %12 = arith.divf %10, %11 : vector<8x1xf32>
    %13 = arith.mulf %7, %7 : vector<8x1xf32>
    %14 = arith.subf %12, %13 : vector<8x1xf32>
    %cst_10 = arith.constant 0.000000e+00 : f32
    %15 = vector.broadcast %cst_10 : f32 to vector<8x1xf32>
    %16 = arith.maximumf %14, %15 : vector<8x1xf32>
    %17 = vector.broadcast %7 : vector<8x1xf32> to vector<8x32xf32>
    %18 = arith.subf %0, %17 : vector<8x32xf32>
    %cst_11 = arith.constant 9.99999974E-6 : f32
    %19 = vector.broadcast %cst_11 : f32 to vector<8x1xf32>
    %20 = arith.addf %16, %19 : vector<8x1xf32>
    %21 = math.rsqrt %20 : vector<8x1xf32>
    %22 = vector.broadcast %21 : vector<8x1xf32> to vector<8x32xf32>
    %23 = arith.mulf %18, %22 : vector<8x32xf32>
    %24 = vector.broadcast %2 : vector<1x32xf32> to vector<8x32xf32>
    %25 = arith.mulf %23, %24 : vector<8x32xf32>
    %26 = vector.broadcast %3 : vector<1x32xf32> to vector<8x32xf32>
    %27 = arith.addf %25, %26 : vector<8x32xf32>
    %28 = arith.truncf %27 : vector<8x32xf32> to vector<8x32xbf16>
    %c0_12 = arith.constant 0 : index
    %c0_13 = arith.constant 0 : index
    %29 = vector.load %arg5[%c0_12, %c0_13] : memref<1x32xf32, #tpu.memory_space<vmem>>, vector<1x32xf32>
    %c0_14 = arith.constant 0 : index
    %c0_15 = arith.constant 0 : index
    %30 = vector.load %arg6[%c0_14, %c0_15] : memref<1x32xf32, #tpu.memory_space<vmem>>, vector<1x32xf32>
    %cst_16 = arith.constant dense<0.000000e+00> : vector<8xf32>
    %31 = vector.multi_reduction <add>, %1, %cst_16 [1] : vector<8x32xf32> to vector<8xf32>
    %32 = vector.shape_cast %31 : vector<8xf32> to vector<8x1xf32>
    %cst_17 = arith.constant 3.200000e+01 : f32
    %33 = vector.broadcast %cst_17 : f32 to vector<8x1xf32>
    %34 = arith.divf %32, %33 : vector<8x1xf32>
    %35 = arith.mulf %1, %1 : vector<8x32xf32>
    %cst_18 = arith.constant dense<0.000000e+00> : vector<8xf32>
    %36 = vector.multi_reduction <add>, %35, %cst_18 [1] : vector<8x32xf32> to vector<8xf32>
    %37 = vector.shape_cast %36 : vector<8xf32> to vector<8x1xf32>
    %cst_19 = arith.constant 3.200000e+01 : f32
    %38 = vector.broadcast %cst_19 : f32 to vector<8x1xf32>
    %39 = arith.divf %37, %38 : vector<8x1xf32>
    %40 = arith.mulf %34, %34 : vector<8x1xf32>
    %41 = arith.subf %39, %40 : vector<8x1xf32>
    %cst_20 = arith.constant 0.000000e+00 : f32
    %42 = vector.broadcast %cst_20 : f32 to vector<8x1xf32>
    %43 = arith.maximumf %41, %42 : vector<8x1xf32>
    %44 = vector.broadcast %34 : vector<8x1xf32> to vector<8x32xf32>
    %45 = arith.subf %1, %44 : vector<8x32xf32>
    %cst_21 = arith.constant 9.99999974E-6 : f32
    %46 = vector.broadcast %cst_21 : f32 to vector<8x1xf32>
    %47 = arith.addf %43, %46 : vector<8x1xf32>
    %48 = math.rsqrt %47 : vector<8x1xf32>
    %49 = vector.broadcast %48 : vector<8x1xf32> to vector<8x32xf32>
    %50 = arith.mulf %45, %49 : vector<8x32xf32>
    %51 = vector.broadcast %29 : vector<1x32xf32> to vector<8x32xf32>
    %52 = arith.mulf %50, %51 : vector<8x32xf32>
    %53 = vector.broadcast %30 : vector<1x32xf32> to vector<8x32xf32>
    %54 = arith.addf %52, %53 : vector<8x32xf32>
    %55 = arith.truncf %54 : vector<8x32xf32> to vector<8x32xbf16>
    %c0_22 = arith.constant 0 : index
    %c0_23 = arith.constant 0 : index
    %56 = vector.load %arg7[%c0_22, %c0_23] : memref<32x32xbf16, #tpu.memory_space<vmem>>, vector<32x32xbf16>
    %cst_24 = arith.constant dense<0.000000e+00> : vector<8x32xf32>
    %57 = tpu.matmul %28, %56, %cst_24 {dimension_numbers = #tpu.dot_dimension_numbers<[1], [0], [0], [1], [0, 0, 1, 1], [], []>} : vector<8x32xbf16>, vector<32x32xbf16>, vector<8x32xf32> -> vector<8x32xf32>
    %58 = arith.truncf %57 : vector<8x32xf32> to vector<8x32xbf16>
    %c0_25 = arith.constant 0 : index
    %c0_26 = arith.constant 0 : index
    %59 = vector.load %arg8[%c0_25, %c0_26] : memref<32x32xbf16, #tpu.memory_space<vmem>>, vector<32x32xbf16>
    %cst_27 = arith.constant dense<0.000000e+00> : vector<8x32xf32>
    %60 = tpu.matmul %55, %59, %cst_27 {dimension_numbers = #tpu.dot_dimension_numbers<[1], [0], [0], [1], [0, 0, 1, 1], [], []>} : vector<8x32xbf16>, vector<32x32xbf16>, vector<8x32xf32> -> vector<8x32xf32>
    %61 = arith.truncf %60 : vector<8x32xf32> to vector<8x32xbf16>
    %c0_28 = arith.constant 0 : index
    %c0_29 = arith.constant 0 : index
    %62 = vector.load %arg9[%c0_28, %c0_29] : memref<32x32xbf16, #tpu.memory_space<vmem>>, vector<32x32xbf16>
    %cst_30 = arith.constant dense<0.000000e+00> : vector<8x32xf32>
    %63 = tpu.matmul %55, %62, %cst_30 {dimension_numbers = #tpu.dot_dimension_numbers<[1], [0], [0], [1], [0, 0, 1, 1], [], []>} : vector<8x32xbf16>, vector<32x32xbf16>, vector<8x32xf32> -> vector<8x32xf32>
    %64 = arith.truncf %63 : vector<8x32xf32> to vector<8x32xbf16>
    %65 = vector.extract_strided_slice %58 {offsets = [0, 0], sizes = [8, 8], strides = [1, 1]} : vector<8x32xbf16> to vector<8x8xbf16>
    %66 = vector.shape_cast %65 : vector<8x8xbf16> to vector<1x8x8xbf16>
    %67 = vector.extract_strided_slice %58 {offsets = [0, 8], sizes = [8, 8], strides = [1, 1]} : vector<8x32xbf16> to vector<8x8xbf16>
    %68 = vector.shape_cast %67 : vector<8x8xbf16> to vector<1x8x8xbf16>
    %69 = vector.extract_strided_slice %58 {offsets = [0, 16], sizes = [8, 8], strides = [1, 1]} : vector<8x32xbf16> to vector<8x8xbf16>
    %70 = vector.shape_cast %69 : vector<8x8xbf16> to vector<1x8x8xbf16>
    %71 = vector.extract_strided_slice %58 {offsets = [0, 24], sizes = [8, 8], strides = [1, 1]} : vector<8x32xbf16> to vector<8x8xbf16>
    %72 = vector.shape_cast %71 : vector<8x8xbf16> to vector<1x8x8xbf16>
    %73 = tpu.concatenate %66, %68, %70, %72 in 0 : vector<1x8x8xbf16>, vector<1x8x8xbf16>, vector<1x8x8xbf16>, vector<1x8x8xbf16> -> vector<4x8x8xbf16>
    %74 = vector.extract_strided_slice %61 {offsets = [0, 0], sizes = [8, 8], strides = [1, 1]} : vector<8x32xbf16> to vector<8x8xbf16>
    %75 = vector.shape_cast %74 : vector<8x8xbf16> to vector<1x8x8xbf16>
    %76 = vector.extract_strided_slice %61 {offsets = [0, 8], sizes = [8, 8], strides = [1, 1]} : vector<8x32xbf16> to vector<8x8xbf16>
    %77 = vector.shape_cast %76 : vector<8x8xbf16> to vector<1x8x8xbf16>
    %78 = vector.extract_strided_slice %61 {offsets = [0, 16], sizes = [8, 8], strides = [1, 1]} : vector<8x32xbf16> to vector<8x8xbf16>
    %79 = vector.shape_cast %78 : vector<8x8xbf16> to vector<1x8x8xbf16>
    %80 = vector.extract_strided_slice %61 {offsets = [0, 24], sizes = [8, 8], strides = [1, 1]} : vector<8x32xbf16> to vector<8x8xbf16>
    %81 = vector.shape_cast %80 : vector<8x8xbf16> to vector<1x8x8xbf16>
    %82 = tpu.concatenate %75, %77, %79, %81 in 0 : vector<1x8x8xbf16>, vector<1x8x8xbf16>, vector<1x8x8xbf16>, vector<1x8x8xbf16> -> vector<4x8x8xbf16>
    %83 = vector.extract_strided_slice %64 {offsets = [0, 0], sizes = [8, 8], strides = [1, 1]} : vector<8x32xbf16> to vector<8x8xbf16>
    %84 = vector.shape_cast %83 : vector<8x8xbf16> to vector<1x8x8xbf16>
    %85 = vector.extract_strided_slice %64 {offsets = [0, 8], sizes = [8, 8], strides = [1, 1]} : vector<8x32xbf16> to vector<8x8xbf16>
    %86 = vector.shape_cast %85 : vector<8x8xbf16> to vector<1x8x8xbf16>
    %87 = vector.extract_strided_slice %64 {offsets = [0, 16], sizes = [8, 8], strides = [1, 1]} : vector<8x32xbf16> to vector<8x8xbf16>
    %88 = vector.shape_cast %87 : vector<8x8xbf16> to vector<1x8x8xbf16>
    %89 = vector.extract_strided_slice %64 {offsets = [0, 24], sizes = [8, 8], strides = [1, 1]} : vector<8x32xbf16> to vector<8x8xbf16>
    %90 = vector.shape_cast %89 : vector<8x8xbf16> to vector<1x8x8xbf16>
    %91 = tpu.concatenate %84, %86, %88, %90 in 0 : vector<1x8x8xbf16>, vector<1x8x8xbf16>, vector<1x8x8xbf16>, vector<1x8x8xbf16> -> vector<4x8x8xbf16>
    "tpu.trace_start"() <{level = 10 : i32, message = "gqd,gkd->gqk"}> : () -> ()
    %cst_31 = arith.constant dense<0.000000e+00> : vector<4x8x8xf32>
    %92 = tpu.matmul %73, %82, %cst_31 {dimension_numbers = #tpu.dot_dimension_numbers<[2], [2], [1], [1], [0, 0, 0, 1, 1, 1], [0], [0]>} : vector<4x8x8xbf16>, vector<4x8x8xbf16>, vector<4x8x8xf32> -> vector<4x8x8xf32>
    "tpu.trace_stop"() : () -> ()
    %cst_32 = arith.constant dense<0xFF800000> : vector<4x8xf32>
    %93 = vector.multi_reduction <maximumf>, %92, %cst_32 [2] : vector<4x8x8xf32> to vector<4x8xf32>
    %94 = vector.shape_cast %93 : vector<4x8xf32> to vector<4x8x1xf32>
    %95 = vector.broadcast %94 : vector<4x8x1xf32> to vector<4x8x8xf32>
    %96 = arith.subf %92, %95 : vector<4x8x8xf32>
    %97 = math.exp %96 : vector<4x8x8xf32>
    %cst_33 = arith.constant dense<0.000000e+00> : vector<4x8xf32>
    %98 = vector.multi_reduction <add>, %97, %cst_33 [2] : vector<4x8x8xf32> to vector<4x8xf32>
    %99 = vector.shape_cast %98 : vector<4x8xf32> to vector<4x8x1xf32>
    %100 = tpu.reciprocal %99 {approx = true} : vector<4x8x1xf32> -> vector<4x8x1xf32>
    %101 = vector.broadcast %100 : vector<4x8x1xf32> to vector<4x8x8xf32>
    %102 = arith.mulf %97, %101 : vector<4x8x8xf32>
    %103 = arith.truncf %102 : vector<4x8x8xf32> to vector<4x8x8xbf16>
    "tpu.trace_start"() <{level = 10 : i32, message = "gqk,gkd->gqd"}> : () -> ()
    %cst_34 = arith.constant dense<0.000000e+00> : vector<4x8x8xf32>
    %104 = tpu.matmul %103, %91, %cst_34 {dimension_numbers = #tpu.dot_dimension_numbers<[2], [1], [1], [2], [0, 0, 0, 1, 1, 2], [0], [0]>} : vector<4x8x8xbf16>, vector<4x8x8xbf16>, vector<4x8x8xf32> -> vector<4x8x8xf32>
    "tpu.trace_stop"() : () -> ()
    %105 = arith.truncf %104 : vector<4x8x8xf32> to vector<4x8x8xbf16>
    %106 = vector.extract_strided_slice %105 {offsets = [0, 0, 0], sizes = [1, 8, 8], strides = [1, 1, 1]} : vector<4x8x8xbf16> to vector<1x8x8xbf16>
    %107 = vector.shape_cast %106 : vector<1x8x8xbf16> to vector<8x8xbf16>
    %108 = vector.extract_strided_slice %105 {offsets = [1, 0, 0], sizes = [1, 8, 8], strides = [1, 1, 1]} : vector<4x8x8xbf16> to vector<1x8x8xbf16>
    %109 = vector.shape_cast %108 : vector<1x8x8xbf16> to vector<8x8xbf16>
    %110 = vector.extract_strided_slice %105 {offsets = [2, 0, 0], sizes = [1, 8, 8], strides = [1, 1, 1]} : vector<4x8x8xbf16> to vector<1x8x8xbf16>
    %111 = vector.shape_cast %110 : vector<1x8x8xbf16> to vector<8x8xbf16>
    %112 = vector.extract_strided_slice %105 {offsets = [3, 0, 0], sizes = [1, 8, 8], strides = [1, 1, 1]} : vector<4x8x8xbf16> to vector<1x8x8xbf16>
    %113 = vector.shape_cast %112 : vector<1x8x8xbf16> to vector<8x8xbf16>
    %114 = tpu.concatenate %107, %109, %111, %113 in 1 : vector<8x8xbf16>, vector<8x8xbf16>, vector<8x8xbf16>, vector<8x8xbf16> -> vector<8x32xbf16>
    %c0_35 = arith.constant 0 : index
    %c0_36 = arith.constant 0 : index
    %115 = vector.load %arg10[%c0_35, %c0_36] : memref<32x32xbf16, #tpu.memory_space<vmem>>, vector<32x32xbf16>
    %cst_37 = arith.constant dense<0.000000e+00> : vector<8x32xf32>
    %116 = tpu.matmul %114, %115, %cst_37 {dimension_numbers = #tpu.dot_dimension_numbers<[1], [0], [0], [1], [0, 0, 1, 1], [], []>} : vector<8x32xbf16>, vector<32x32xbf16>, vector<8x32xf32> -> vector<8x32xf32>
    %117 = arith.addf %116, %0 : vector<8x32xf32>
    %c0_38 = arith.constant 0 : index
    %c0_39 = arith.constant 0 : index
    %118 = vector.load %arg11[%c0_38, %c0_39] : memref<1x32xf32, #tpu.memory_space<vmem>>, vector<1x32xf32>
    %c0_40 = arith.constant 0 : index
    %c0_41 = arith.constant 0 : index
    %119 = vector.load %arg12[%c0_40, %c0_41] : memref<1x32xf32, #tpu.memory_space<vmem>>, vector<1x32xf32>
    %cst_42 = arith.constant dense<0.000000e+00> : vector<8xf32>
    %120 = vector.multi_reduction <add>, %117, %cst_42 [1] : vector<8x32xf32> to vector<8xf32>
    %121 = vector.shape_cast %120 : vector<8xf32> to vector<8x1xf32>
    %cst_43 = arith.constant 3.200000e+01 : f32
    %122 = vector.broadcast %cst_43 : f32 to vector<8x1xf32>
    %123 = arith.divf %121, %122 : vector<8x1xf32>
    %124 = arith.mulf %117, %117 : vector<8x32xf32>
    %cst_44 = arith.constant dense<0.000000e+00> : vector<8xf32>
    %125 = vector.multi_reduction <add>, %124, %cst_44 [1] : vector<8x32xf32> to vector<8xf32>
    %126 = vector.shape_cast %125 : vector<8xf32> to vector<8x1xf32>
    %cst_45 = arith.constant 3.200000e+01 : f32
    %127 = vector.broadcast %cst_45 : f32 to vector<8x1xf32>
    %128 = arith.divf %126, %127 : vector<8x1xf32>
    %129 = arith.mulf %123, %123 : vector<8x1xf32>
    %130 = arith.subf %128, %129 : vector<8x1xf32>
    %cst_46 = arith.constant 0.000000e+00 : f32
    %131 = vector.broadcast %cst_46 : f32 to vector<8x1xf32>
    %132 = arith.maximumf %130, %131 : vector<8x1xf32>
    %133 = vector.broadcast %123 : vector<8x1xf32> to vector<8x32xf32>
    %134 = arith.subf %117, %133 : vector<8x32xf32>
    %cst_47 = arith.constant 9.99999974E-6 : f32
    %135 = vector.broadcast %cst_47 : f32 to vector<8x1xf32>
    %136 = arith.addf %132, %135 : vector<8x1xf32>
    %137 = math.rsqrt %136 : vector<8x1xf32>
    %138 = vector.broadcast %137 : vector<8x1xf32> to vector<8x32xf32>
    %139 = arith.mulf %134, %138 : vector<8x32xf32>
    %140 = vector.broadcast %118 : vector<1x32xf32> to vector<8x32xf32>
    %141 = arith.mulf %139, %140 : vector<8x32xf32>
    %142 = vector.broadcast %119 : vector<1x32xf32> to vector<8x32xf32>
    %143 = arith.addf %141, %142 : vector<8x32xf32>
    %144 = arith.negf %143 : vector<8x32xf32>
    %145 = math.exp %144 : vector<8x32xf32>
    %cst_48 = arith.constant 1.000000e+00 : f32
    %146 = vector.broadcast %cst_48 : f32 to vector<8x32xf32>
    %147 = arith.addf %146, %145 : vector<8x32xf32>
    %148 = arith.divf %146, %147 : vector<8x32xf32>
    %149 = arith.mulf %143, %148 : vector<8x32xf32>
    %150 = arith.truncf %149 : vector<8x32xf32> to vector<8x32xbf16>
    %c0_49 = arith.constant 0 : index
    %c0_50 = arith.constant 0 : index
    %151 = vector.load %arg13[%c0_49, %c0_50] : memref<32x32xbf16, #tpu.memory_space<vmem>>, vector<32x32xbf16>
    %cst_51 = arith.constant dense<0.000000e+00> : vector<8x32xf32>
    %152 = tpu.matmul %150, %151, %cst_51 {dimension_numbers = #tpu.dot_dimension_numbers<[1], [0], [0], [1], [0, 0, 1, 1], [], []>} : vector<8x32xbf16>, vector<32x32xbf16>, vector<8x32xf32> -> vector<8x32xf32>
    %153 = arith.addf %152, %117 : vector<8x32xf32>
    %c0_52 = arith.constant 0 : index
    %c0_53 = arith.constant 0 : index
    %154 = vector.load %arg14[%c0_52, %c0_53] : memref<8x32xf32, #tpu.memory_space<vmem>>, vector<8x32xf32>
    tpu.vector_store %arg14[%c0_52, %c0_53], %153 {strides = array<i32>} : memref<8x32xf32, #tpu.memory_space<vmem>>, vector<8x32xf32>,
    return
  }
  func.func @transform_0(%arg0: i32) -> (i32, i32) {
    %c0_i32 = arith.constant 0 : i32
    %c0_i32_0 = arith.constant 0 : i32
    return %arg0, %c0_i32 : i32, i32
  }
  func.func @transform_1(%arg0: i32) -> (i32, i32) {
    %c0_i32 = arith.constant 0 : i32
    %c0_i32_0 = arith.constant 0 : i32
    return %arg0, %c0_i32 : i32, i32
  }
  func.func @transform_2(%arg0: i32) -> (i32, i32) {
    %c0_i32 = arith.constant 0 : i32
    %c0_i32_0 = arith.constant 0 : i32
    %c0_i32_1 = arith.constant 0 : i32
    return %c0_i32, %c0_i32_0 : i32, i32
  }
  func.func @transform_3(%arg0: i32) -> (i32, i32) {
    %c0_i32 = arith.constant 0 : i32
    %c0_i32_0 = arith.constant 0 : i32
    %c0_i32_1 = arith.constant 0 : i32
    return %c0_i32, %c0_i32_0 : i32, i32
  }
  func.func @transform_4(%arg0: i32) -> (i32, i32) {
    %c0_i32 = arith.constant 0 : i32
    %c0_i32_0 = arith.constant 0 : i32
    %c0_i32_1 = arith.constant 0 : i32
    return %c0_i32, %c0_i32_0 : i32, i32
  }
  func.func @transform_5(%arg0: i32) -> (i32, i32) {
    %c0_i32 = arith.constant 0 : i32
    %c0_i32_0 = arith.constant 0 : i32
    %c0_i32_1 = arith.constant 0 : i32
    return %c0_i32, %c0_i32_0 : i32, i32
  }
  func.func @transform_6(%arg0: i32) -> (i32, i32) {
    %c0_i32 = arith.constant 0 : i32
    %c0_i32_0 = arith.constant 0 : i32
    %c0_i32_1 = arith.constant 0 : i32
    return %c0_i32, %c0_i32_0 : i32, i32
  }
  func.func @transform_7(%arg0: i32) -> (i32, i32) {
    %c0_i32 = arith.constant 0 : i32
    %c0_i32_0 = arith.constant 0 : i32
    %c0_i32_1 = arith.constant 0 : i32
    return %c0_i32, %c0_i32_0 : i32, i32
  }
  func.func @transform_8(%arg0: i32) -> (i32, i32) {
    %c0_i32 = arith.constant 0 : i32
    %c0_i32_0 = arith.constant 0 : i32
    %c0_i32_1 = arith.constant 0 : i32
    return %c0_i32, %c0_i32_0 : i32, i32
  }
  func.func @transform_9(%arg0: i32) -> (i32, i32) {
    %c0_i32 = arith.constant 0 : i32
    %c0_i32_0 = arith.constant 0 : i32
    %c0_i32_1 = arith.constant 0 : i32
    return %c0_i32, %c0_i32_0 : i32, i32
  }
  func.func @transform_10(%arg0: i32) -> (i32, i32) {
    %c0_i32 = arith.constant 0 : i32
    %c0_i32_0 = arith.constant 0 : i32
    %c0_i32_1 = arith.constant 0 : i32
    return %c0_i32, %c0_i32_0 : i32, i32
  }
  func.func @transform_11(%arg0: i32) -> (i32, i32) {
    %c0_i32 = arith.constant 0 : i32
    %c0_i32_0 = arith.constant 0 : i32
    %c0_i32_1 = arith.constant 0 : i32
    return %c0_i32, %c0_i32_0 : i32, i32
  }
  func.func @transform_12(%arg0: i32) -> (i32, i32) {
    %c0_i32 = arith.constant 0 : i32
    %c0_i32_0 = arith.constant 0 : i32
    %c0_i32_1 = arith.constant 0 : i32
    return %c0_i32, %c0_i32_0 : i32, i32
  }
  func.func @transform_13(%arg0: i32) -> (i32, i32) {
    %c0_i32 = arith.constant 0 : i32
    %c0_i32_0 = arith.constant 0 : i32
    return %arg0, %c0_i32 : i32, i32
  }
}

</mosaic_0001>

<llo_original>
// kernel: tpu_custom_call.1
$region0: #{tpu_custom_call.1}
  #allocation0 [shape = 'u32[]', space=smem, size = 0x4, offset = 0x4, fixed_abs, tag = 'smem constant byte address 0x4 - core index']
  #allocation1 [shape = 'u32[144,128]{1,0:T(1,128)}', space=vmem, size = 0x12000, scoped, tag = 'internal scratch']
  %s0 = inlined_call_operand.hbm [shape: f32[16,32], index: 0, kind: input, shape index: {}]
  %s1 = inlined_call_operand.hbm [shape: f32[16,32], index: 1, kind: input, shape index: {}]
  %s2 = inlined_call_operand.vmem [shape: f32[1,32], index: 2, kind: input, shape index: {}]
  %s3 = inlined_call_operand.vmem [shape: f32[1,32], index: 3, kind: input, shape index: {}]
  %s4 = inlined_call_operand.hbm [shape: f32[1,32], index: 4, kind: input, shape index: {}]
  %s5 = inlined_call_operand.hbm [shape: f32[1,32], index: 5, kind: input, shape index: {}]
  %s6 = inlined_call_operand.vmem [shape: bf16[32,32], index: 6, kind: input, shape index: {}]
  %s7 = inlined_call_operand.hbm [shape: bf16[32,32], index: 7, kind: input, shape index: {}]
  %s8 = inlined_call_operand.hbm [shape: bf16[32,32], index: 8, kind: input, shape index: {}]
  %s9 = inlined_call_operand.vmem [shape: bf16[32,32], index: 9, kind: input, shape index: {}]
  %s10 = inlined_call_operand.vmem [shape: f32[1,32], index: 10, kind: input, shape index: {}]
  %s11 = inlined_call_operand.vmem [shape: f32[1,32], index: 11, kind: input, shape index: {}]
  %s12 = inlined_call_operand.hbm [shape: bf16[32,32], index: 12, kind: input, shape index: {}]
  %s13 = inlined_call_operand.hbm [shape: f32[16,32], index: 13, kind: output, shape index: {}]
  %s14 = sld [smem:[#allocation0]]
  $region113: #{tpu_custom_call.1} parent=0
    _
  %s16 = ssub.s32 1, %s14
  %s17 = scalar_select 0, %s16, %s14
  $region1: #{tpu_custom_call.1} parent=0
    #allocation2 [shape = 'u8[8192]{0}', space=vmem, size = 0x2000, scoped, tag = 'input window, operand 0']
    #allocation3 [shape = 's32[2]{0}', space=sflag, size = 0x8, scoped, tag = 'scoped memory for tpu_custom_call.1']
    #allocation4 [shape = 's32[2]{0}', space=sflag, size = 0x8, scoped, tag = 'scoped memory for tpu_custom_call.1']
    #allocation5 [shape = 'u8[8192]{0}', space=vmem, size = 0x2000, scoped, tag = 'input window, operand 1']
    #allocation6 [shape = 's32[2]{0}', space=sflag, size = 0x8, scoped, tag = 'scoped memory for tpu_custom_call.1']
    #allocation7 [shape = 'u8[512]{0}', space=vmem, size = 0x400, scoped, tag = 'input window, operand 4, single buffered']
    #allocation8 [shape = 'u8[512]{0}', space=vmem, size = 0x400, scoped, tag = 'input window, operand 5, single buffered']
    #allocation9 [shape = 's32[1]{0}', space=sflag, size = 0x4, scoped, tag = 'scoped memory for tpu_custom_call.1']
    #allocation10 [shape = 'u8[8192]{0}', space=vmem, size = 0x2000, scoped, tag = 'input window, operand 7, single buffered']
    #allocation11 [shape = 'u8[8192]{0}', space=vmem, size = 0x2000, scoped, tag = 'input window, operand 8, single buffered']
    #allocation12 [shape = 's32[1]{0}', space=sflag, size = 0x4, scoped, tag = 'scoped memory for tpu_custom_call.1']
    #allocation13 [shape = 'u8[8192]{0}', space=vmem, size = 0x2000, scoped, tag = 'input window, operand 12, single buffered']
    #allocation14 [shape = 'u8[8192]{0}', space=vmem, size = 0x2000, scoped, tag = 'output window, operand 0']
    %18 = vsyncpa [#allocation3], 0
    %s19 = scalar_lea.sflag [#allocation3], 1
    %20 = vsyncpa %s19, 0
    %21 = vsyncpa [#allocation6], 0
    %s22 = scalar_lea.sflag [#allocation6], 1
    %23 = vsyncpa %s22, 0
    %24 = vsyncpa [#allocation9], 0
    %25 = vsyncpa [#allocation12], 0
    %26 = vsyncpa [#allocation4], 0
    %s27 = scalar_lea.sflag [#allocation4], 1
    %28 = vsyncpa %s27, 0
    loop: start=0, step=1, limit=4
    $region2: #{tpu_custom_call.1} parent=1 // loop_pre_header
      _
    $region3: #{tpu_custom_call.1} parent=1 // loop_header
      %s30 = sphi 0, %s34
      %p31 = scmp.ge.s32.totalorder %s30, 4
      %s40 = sphi 0, %s42
      %s43 = sphi 0, %s40
      %s44 = sphi 0, %s43
      %s60 = sphi 0, %s44
      %s66 = sphi 0, %s68
      %s69 = sphi 0, %s66
      %s70 = sphi 0, %s69
      %s86 = sphi 0, %s70
      %s90 = sphi 0, %s90
      %s92 = sphi 0, %s90
      %s93 = sphi 0, %s92
      %s107 = sphi 0, %s93
      %s111 = sphi 0, %s111
      %s113 = sphi 0, %s111
      %s114 = sphi 0, %s113
      %s128 = sphi 0, %s114
      %s132 = sphi 0, %s132
      %s134 = sphi 0, %s132
      %s135 = sphi 0, %s134
      %s149 = sphi 0, %s135
      %s153 = sphi 0, %s153
      %s155 = sphi 0, %s153
      %s156 = sphi 0, %s155
      %s170 = sphi 0, %s156
      %s174 = sphi 0, %s174
      %s176 = sphi 0, %s174
      %s177 = sphi 0, %s176
      %s191 = sphi 0, %s177
      %s195 = sphi 0, %s195
      %s197 = sphi 0, %s195
      %s198 = sphi 0, %s197
      %s212 = sphi 0, %s198
      %s216 = sphi 0, %s216
      %s218 = sphi 0, %s216
      %s219 = sphi 0, %s218
      %s233 = sphi 0, %s219
      %s237 = sphi 0, %s237
      %s239 = sphi 0, %s237
      %s240 = sphi 0, %s239
      %s254 = sphi 0, %s240
      %s258 = sphi 0, %s258
      %s260 = sphi 0, %s258
      %s261 = sphi 0, %s260
      %s275 = sphi 0, %s261
      %s279 = sphi 0, %s279
      %s281 = sphi 0, %s279
      %s282 = sphi 0, %s281
      %s296 = sphi 0, %s282
      %s300 = sphi 0, %s300
      %s302 = sphi 0, %s300
      %s303 = sphi 0, %s302
      %s317 = sphi 0, %s303
      %s323 = sphi 0, %s325
      %s326 = sphi 0, %s323
      %s327 = sphi 0, %s326
      %s343 = sphi 0, %s327
    $region4: #{tpu_custom_call.1} parent=1 // loop_header_branch
      %33 = sbr.rel (%p31) target = $region8
    $region5: #{tpu_custom_call.1} parent=1 // loop_body
      %s35 = ssub.s32 %s30, 1
      %s36 = ssub.s32 %s30, 2
      %s37 = sadd.s32 %s30, 1
      %s38 = ssub.s32 %s30, %s37
      %p39 = scmp.eq.s32.totalorder %s38, 0
      %s41 = sadd.s32 %s40, 1
      %s42 = scalar_select %p39, %s40, %s41
      %p45 = pneg %p39
      %p46 = scmp.eq.s32.totalorder %s30, 1
      %p47 = por %p45, %p46
      %p48 = scmp.ne.s32.totalorder %s40, %s43
      %p49 = scmp.eq.s32.totalorder %s30, 0
      %p50 = por %p48, %p49
      %p51 = scmp.ne.s32.totalorder %s40, %s43
      %p52 = scmp.eq.s32.totalorder %s35, 1
      %p53 = por %p51, %p52
      %p54 = scmp.ne.s32.totalorder %s43, %s44
      %p55 = scmp.eq.s32.totalorder %s35, 0
      %p56 = por %p54, %p55
      %p57 = scmp.ne.s32.totalorder %s43, %s44
      %p58 = scmp.eq.s32.totalorder %s36, 1
      %p59 = por %p57, %p58
      %p61 = scmp.ne.s32.totalorder %s44, %s60
      %p62 = scmp.eq.s32.totalorder %s36, 0
      %p63 = por %p61, %p62
      %s64 = ssub.s32 %s30, %s37
      %p65 = scmp.eq.s32.totalorder %s64, 0
      %s67 = sadd.s32 %s66, 1
      %s68 = scalar_select %p65, %s66, %s67
      %p71 = pneg %p65
      %p72 = scmp.eq.s32.totalorder %s30, 1
      %p73 = por %p71, %p72
      %p74 = scmp.ne.s32.totalorder %s66, %s69
      %p75 = scmp.eq.s32.totalorder %s30, 0
      %p76 = por %p74, %p75
      %p77 = scmp.ne.s32.totalorder %s66, %s69
      %p78 = scmp.eq.s32.totalorder %s35, 1
      %p79 = por %p77, %p78
      %p80 = scmp.ne.s32.totalorder %s69, %s70
      %p81 = scmp.eq.s32.totalorder %s35, 0
      %p82 = por %p80, %p81
      %p83 = scmp.ne.s32.totalorder %s69, %s70
      %p84 = scmp.eq.s32.totalorder %s36, 1
      %p85 = por %p83, %p84
      %p87 = scmp.ne.s32.totalorder %s70, %s86
      %p88 = scmp.eq.s32.totalorder %s36, 0
      %p89 = por %p87, %p88
      %s91 = sadd.s32 %s90, 1
      %p94 = scmp.eq.s32.totalorder %s30, 1
      %p95 = scmp.ne.s32.totalorder %s90, %s92
      %p96 = scmp.eq.s32.totalorder %s30, 0
      %p97 = por %p95, %p96
      %p98 = scmp.ne.s32.totalorder %s90, %s92
      %p99 = scmp.eq.s32.totalorder %s35, 1
      %p100 = por %p98, %p99
      %p101 = scmp.ne.s32.totalorder %s92, %s93
      %p102 = scmp.eq.s32.totalorder %s35, 0
      %p103 = por %p101, %p102
      %p104 = scmp.ne.s32.totalorder %s92, %s93
      %p105 = scmp.eq.s32.totalorder %s36, 1
      %p106 = por %p104, %p105
      %p108 = scmp.ne.s32.totalorder %s93, %s107
      %p109 = scmp.eq.s32.totalorder %s36, 0
      %p110 = por %p108, %p109
      %s112 = sadd.s32 %s111, 1
      %p115 = scmp.eq.s32.totalorder %s30, 1
      %p116 = scmp.ne.s32.totalorder %s111, %s113
      %p117 = scmp.eq.s32.totalorder %s30, 0
      %p118 = por %p116, %p117
      %p119 = scmp.ne.s32.totalorder %s111, %s113
      %p120 = scmp.eq.s32.totalorder %s35, 1
      %p121 = por %p119, %p120
      %p122 = scmp.ne.s32.totalorder %s113, %s114
      %p123 = scmp.eq.s32.totalorder %s35, 0
      %p124 = por %p122, %p123
      %p125 = scmp.ne.s32.totalorder %s113, %s114
      %p126 = scmp.eq.s32.totalorder %s36, 1
      %p127 = por %p125, %p126
      %p129 = scmp.ne.s32.totalorder %s114, %s128
      %p130 = scmp.eq.s32.totalorder %s36, 0
      %p131 = por %p129, %p130
      %s133 = sadd.s32 %s132, 1
      %p136 = scmp.eq.s32.totalorder %s30, 1
      %p137 = scmp.ne.s32.totalorder %s132, %s134
      %p138 = scmp.eq.s32.totalorder %s30, 0
      %p139 = por %p137, %p138
      %p140 = scmp.ne.s32.totalorder %s132, %s134
      %p141 = scmp.eq.s32.totalorder %s35, 1
      %p142 = por %p140, %p141
      %p143 = scmp.ne.s32.totalorder %s134, %s135
      %p144 = scmp.eq.s32.totalorder %s35, 0
      %p145 = por %p143, %p144
      %p146 = scmp.ne.s32.totalorder %s134, %s135
      %p147 = scmp.eq.s32.totalorder %s36, 1
      %p148 = por %p146, %p147
      %p150 = scmp.ne.s32.totalorder %s135, %s149
      %p151 = scmp.eq.s32.totalorder %s36, 0
      %p152 = por %p150, %p151
      %s154 = sadd.s32 %s153, 1
      %p157 = scmp.eq.s32.totalorder %s30, 1
      %p158 = scmp.ne.s32.totalorder %s153, %s155
      %p159 = scmp.eq.s32.totalorder %s30, 0
      %p160 = por %p158, %p159
      %p161 = scmp.ne.s32.totalorder %s153, %s155
      %p162 = scmp.eq.s32.totalorder %s35, 1
      %p163 = por %p161, %p162
      %p164 = scmp.ne.s32.totalorder %s155, %s156
      %p165 = scmp.eq.s32.totalorder %s35, 0
      %p166 = por %p164, %p165
      %p167 = scmp.ne.s32.totalorder %s155, %s156
      %p168 = scmp.eq.s32.totalorder %s36, 1
      %p169 = por %p167, %p168
      %p171 = scmp.ne.s32.totalorder %s156, %s170
      %p172 = scmp.eq.s32.totalorder %s36, 0
      %p173 = por %p171, %p172
      %s175 = sadd.s32 %s174, 1
      %p178 = scmp.eq.s32.totalorder %s30, 1
      %p179 = scmp.ne.s32.totalorder %s174, %s176
      %p180 = scmp.eq.s32.totalorder %s30, 0
      %p181 = por %p179, %p180
      %p182 = scmp.ne.s32.totalorder %s174, %s176
      %p183 = scmp.eq.s32.totalorder %s35, 1
      %p184 = por %p182, %p183
      %p185 = scmp.ne.s32.totalorder %s176, %s177
      %p186 = scmp.eq.s32.totalorder %s35, 0
      %p187 = por %p185, %p186
      %p188 = scmp.ne.s32.totalorder %s176, %s177
      %p189 = scmp.eq.s32.totalorder %s36, 1
      %p190 = por %p188, %p189
      %p192 = scmp.ne.s32.totalorder %s177, %s191
      %p193 = scmp.eq.s32.totalorder %s36, 0
      %p194 = por %p192, %p193
      %s196 = sadd.s32 %s195, 1
      %p199 = scmp.eq.s32.totalorder %s30, 1
      %p200 = scmp.ne.s32.totalorder %s195, %s197
      %p201 = scmp.eq.s32.totalorder %s30, 0
      %p202 = por %p200, %p201
      %p203 = scmp.ne.s32.totalorder %s195, %s197
      %p204 = scmp.eq.s32.totalorder %s35, 1
      %p205 = por %p203, %p204
      %p206 = scmp.ne.s32.totalorder %s197, %s198
      %p207 = scmp.eq.s32.totalorder %s35, 0
      %p208 = por %p206, %p207
      %p209 = scmp.ne.s32.totalorder %s197, %s198
      %p210 = scmp.eq.s32.totalorder %s36, 1
      %p211 = por %p209, %p210
      %p213 = scmp.ne.s32.totalorder %s198, %s212
      %p214 = scmp.eq.s32.totalorder %s36, 0
      %p215 = por %p213, %p214
      %s217 = sadd.s32 %s216, 1
      %p220 = scmp.eq.s32.totalorder %s30, 1
      %p221 = scmp.ne.s32.totalorder %s216, %s218
      %p222 = scmp.eq.s32.totalorder %s30, 0
      %p223 = por %p221, %p222
      %p224 = scmp.ne.s32.totalorder %s216, %s218
      %p225 = scmp.eq.s32.totalorder %s35, 1
      %p226 = por %p224, %p225
      %p227 = scmp.ne.s32.totalorder %s218, %s219
      %p228 = scmp.eq.s32.totalorder %s35, 0
      %p229 = por %p227, %p228
      %p230 = scmp.ne.s32.totalorder %s218, %s219
      %p231 = scmp.eq.s32.totalorder %s36, 1
      %p232 = por %p230, %p231
      %p234 = scmp.ne.s32.totalorder %s219, %s233
      %p235 = scmp.eq.s32.totalorder %s36, 0
      %p236 = por %p234, %p235
      %s238 = sadd.s32 %s237, 1
      %p241 = scmp.eq.s32.totalorder %s30, 1
      %p242 = scmp.ne.s32.totalorder %s237, %s239
      %p243 = scmp.eq.s32.totalorder %s30, 0
      %p244 = por %p242, %p243
      %p245 = scmp.ne.s32.totalorder %s237, %s239
      %p246 = scmp.eq.s32.totalorder %s35, 1
      %p247 = por %p245, %p246
      %p248 = scmp.ne.s32.totalorder %s239, %s240
      %p249 = scmp.eq.s32.totalorder %s35, 0
      %p250 = por %p248, %p249
      %p251 = scmp.ne.s32.totalorder %s239, %s240
      %p252 = scmp.eq.s32.totalorder %s36, 1
      %p253 = por %p251, %p252
      %p255 = scmp.ne.s32.totalorder %s240, %s254
      %p256 = scmp.eq.s32.totalorder %s36, 0
      %p257 = por %p255, %p256
      %s259 = sadd.s32 %s258, 1
      %p262 = scmp.eq.s32.totalorder %s30, 1
      %p263 = scmp.ne.s32.totalorder %s258, %s260
      %p264 = scmp.eq.s32.totalorder %s30, 0
      %p265 = por %p263, %p264
      %p266 = scmp.ne.s32.totalorder %s258, %s260
      %p267 = scmp.eq.s32.totalorder %s35, 1
      %p268 = por %p266, %p267
      %p269 = scmp.ne.s32.totalorder %s260, %s261
      %p270 = scmp.eq.s32.totalorder %s35, 0
      %p271 = por %p269, %p270
      %p272 = scmp.ne.s32.totalorder %s260, %s261
      %p273 = scmp.eq.s32.totalorder %s36, 1
      %p274 = por %p272, %p273
      %p276 = scmp.ne.s32.totalorder %s261, %s275
      %p277 = scmp.eq.s32.totalorder %s36, 0
      %p278 = por %p276, %p277
      %s280 = sadd.s32 %s279, 1
      %p283 = scmp.eq.s32.totalorder %s30, 1
      %p284 = scmp.ne.s32.totalorder %s279, %s281
      %p285 = scmp.eq.s32.totalorder %s30, 0
      %p286 = por %p284, %p285
      %p287 = scmp.ne.s32.totalorder %s279, %s281
      %p288 = scmp.eq.s32.totalorder %s35, 1
      %p289 = por %p287, %p288
      %p290 = scmp.ne.s32.totalorder %s281, %s282
      %p291 = scmp.eq.s32.totalorder %s35, 0
      %p292 = por %p290, %p291
      %p293 = scmp.ne.s32.totalorder %s281, %s282
      %p294 = scmp.eq.s32.totalorder %s36, 1
      %p295 = por %p293, %p294
      %p297 = scmp.ne.s32.totalorder %s282, %s296
      %p298 = scmp.eq.s32.totalorder %s36, 0
      %p299 = por %p297, %p298
      %s301 = sadd.s32 %s300, 1
      %p304 = scmp.eq.s32.totalorder %s30, 1
      %p305 = scmp.ne.s32.totalorder %s300, %s302
      %p306 = scmp.eq.s32.totalorder %s30, 0
      %p307 = por %p305, %p306
      %p308 = scmp.ne.s32.totalorder %s300, %s302
      %p309 = scmp.eq.s32.totalorder %s35, 1
      %p310 = por %p308, %p309
      %p311 = scmp.ne.s32.totalorder %s302, %s303
      %p312 = scmp.eq.s32.totalorder %s35, 0
      %p313 = por %p311, %p312
      %p314 = scmp.ne.s32.totalorder %s302, %s303
      %p315 = scmp.eq.s32.totalorder %s36, 1
      %p316 = por %p314, %p315
      %p318 = scmp.ne.s32.totalorder %s303, %s317
      %p319 = scmp.eq.s32.totalorder %s36, 0
      %p320 = por %p318, %p319
      %s321 = ssub.s32 %s30, %s37
      %p322 = scmp.eq.s32.totalorder %s321, 0
      %s324 = sadd.s32 %s323, 1
      %s325 = scalar_select %p322, %s323, %s324
      %p328 = pneg %p322
      %p329 = scmp.eq.s32.totalorder %s30, 1
      %p330 = por %p328, %p329
      %p331 = scmp.ne.s32.totalorder %s323, %s326
      %p332 = scmp.eq.s32.totalorder %s30, 0
      %p333 = por %p331, %p332
      %p334 = scmp.ne.s32.totalorder %s323, %s326
      %p335 = scmp.eq.s32.totalorder %s35, 1
      %p336 = por %p334, %p335
      %p337 = scmp.ne.s32.totalorder %s326, %s327
      %p338 = scmp.eq.s32.totalorder %s35, 0
      %p339 = por %p337, %p338
      %p340 = scmp.ne.s32.totalorder %s326, %s327
      %p341 = scmp.eq.s32.totalorder %s36, 1
      %p342 = por %p340, %p341
      %p344 = scmp.ne.s32.totalorder %s327, %s343
      %p345 = scmp.eq.s32.totalorder %s36, 0
      %p346 = por %p344, %p345
      %p347 = scmp.le.s32.totalorder 1, %s30
      %p348 = scmp.lt.s32.totalorder %s30, 3
      %p349 = pnand %p347, %p348
      %p350 = pneg %p349
      // Predicated region
      $region9: #{tpu_custom_call.1} parent=5 // pred_check
        _
      $region10: #{tpu_custom_call.1} parent=5 // pred_check_branch
        %352 = sbr.rel (%p349) target = $region12
      $region11: #{tpu_custom_call.1} parent=5 // pred_region
        %s353 = ssub.s32 %s30, 1
        // Predicated region
        $region13: #{tpu_custom_call.1} parent=11 // pred_check
          %p354 = pneg %p103
        $region14: #{tpu_custom_call.1} parent=11 // pred_check_branch
          %356 = sbr.rel (%p354) target = $region16
        $region15: #{tpu_custom_call.1} parent=11 // pred_region
          _
        $region16: #{tpu_custom_call.1} parent=11 // pred_fallthru
          _
        // Predicated region
        $region17: #{tpu_custom_call.1} parent=11 // pred_check
          %p357 = pneg %p124
        $region18: #{tpu_custom_call.1} parent=11 // pred_check_branch
          %359 = sbr.rel (%p357) target = $region20
        $region19: #{tpu_custom_call.1} parent=11 // pred_region
          _
        $region20: #{tpu_custom_call.1} parent=11 // pred_fallthru
          _
        // Predicated region
        $region21: #{tpu_custom_call.1} parent=11 // pred_check
          %p360 = pneg %p145
        $region22: #{tpu_custom_call.1} parent=11 // pred_check_branch
          %362 = sbr.rel (%p360) target = $region24
        $region23: #{tpu_custom_call.1} parent=11 // pred_region
          %s364 = ssub.s32 16, 16
          %365 = vsyncadd [#allocation6], %s364
          %s367 = sshll.u32 [#allocation7], 4
          %s368 = int_to_ptr.vmem [resolvable:$true] %s367
          %370 = dma.hbm_to_vmem [thread:$0]  %s4, 16, %s368, [#allocation6]
        $region24: #{tpu_custom_call.1} parent=11 // pred_fallthru
          _
        // Predicated region
        $region25: #{tpu_custom_call.1} parent=11 // pred_check
          %p371 = pneg %p166
        $region26: #{tpu_custom_call.1} parent=11 // pred_check_branch
          %373 = sbr.rel (%p371) target = $region28
        $region27: #{tpu_custom_call.1} parent=11 // pred_region
          %s375 = ssub.s32 16, 16
          %376 = vsyncadd [#allocation9], %s375
          %s378 = sshll.u32 [#allocation8], 4
          %s379 = int_to_ptr.vmem [resolvable:$true] %s378
          %381 = dma.hbm_to_vmem [thread:$0]  %s5, 16, %s379, [#allocation9]
        $region28: #{tpu_custom_call.1} parent=11 // pred_fallthru
          _
        // Predicated region
        $region29: #{tpu_custom_call.1} parent=11 // pred_check
          %p382 = pneg %p187
        $region30: #{tpu_custom_call.1} parent=11 // pred_check_branch
          %384 = sbr.rel (%p382) target = $region32
        $region31: #{tpu_custom_call.1} parent=11 // pred_region
          _
        $region32: #{tpu_custom_call.1} parent=11 // pred_fallthru
          _
        // Predicated region
        $region33: #{tpu_custom_call.1} parent=11 // pred_check
          %p385 = pneg %p208
        $region34: #{tpu_custom_call.1} parent=11 // pred_check_branch
          %387 = sbr.rel (%p385) target = $region36
        $region35: #{tpu_custom_call.1} parent=11 // pred_region
          %s389 = ssub.s32 256, 256
          %390 = vsyncadd [#allocation9], %s389
          %s391 = sshll.u32 [#allocation10], 4
          %s392 = int_to_ptr.vmem [resolvable:$true] %s391
          %397 = dma.hbm_to_vmem [thread:$0]  %s7, 256, %s392, [#allocation9], 64, 64, 4
        $region36: #{tpu_custom_call.1} parent=11 // pred_fallthru
          _
        // Predicated region
        $region37: #{tpu_custom_call.1} parent=11 // pred_check
          %p398 = pneg %p229
        $region38: #{tpu_custom_call.1} parent=11 // pred_check_branch
          %400 = sbr.rel (%p398) target = $region40
        $region39: #{tpu_custom_call.1} parent=11 // pred_region
          %s402 = ssub.s32 256, 256
          %403 = vsyncadd [#allocation12], %s402
          %s404 = sshll.u32 [#allocation11], 4
          %s405 = int_to_ptr.vmem [resolvable:$true] %s404
          %410 = dma.hbm_to_vmem [thread:$0]  %s8, 256, %s405, [#allocation12], 64, 64, 4
        $region40: #{tpu_custom_call.1} parent=11 // pred_fallthru
          _
        // Predicated region
        $region41: #{tpu_custom_call.1} parent=11 // pred_check
          %p411 = pneg %p250
        $region42: #{tpu_custom_call.1} parent=11 // pred_check_branch
          %413 = sbr.rel (%p411) target = $region44
        $region43: #{tpu_custom_call.1} parent=11 // pred_region
          _
        $region44: #{tpu_custom_call.1} parent=11 // pred_fallthru
          _
        // Predicated region
        $region45: #{tpu_custom_call.1} parent=11 // pred_check
          %p414 = pneg %p271
        $region46: #{tpu_custom_call.1} parent=11 // pred_check_branch
          %416 = sbr.rel (%p414) target = $region48
        $region47: #{tpu_custom_call.1} parent=11 // pred_region
          _
        $region48: #{tpu_custom_call.1} parent=11 // pred_fallthru
          _
        // Predicated region
        $region49: #{tpu_custom_call.1} parent=11 // pred_check
          %p417 = pneg %p292
        $region50: #{tpu_custom_call.1} parent=11 // pred_check_branch
          %419 = sbr.rel (%p417) target = $region52
        $region51: #{tpu_custom_call.1} parent=11 // pred_region
          _
        $region52: #{tpu_custom_call.1} parent=11 // pred_fallthru
          _
        // Predicated region
        $region53: #{tpu_custom_call.1} parent=11 // pred_check
          %p420 = pneg %p313
        $region54: #{tpu_custom_call.1} parent=11 // pred_check_branch
          %422 = sbr.rel (%p420) target = $region56
        $region55: #{tpu_custom_call.1} parent=11 // pred_region
          %s424 = ssub.s32 256, 256
          %425 = vsyncadd [#allocation12], %s424
          %s426 = sshll.u32 [#allocation13], 4
          %s427 = int_to_ptr.vmem [resolvable:$true] %s426
          %432 = dma.hbm_to_vmem [thread:$0]  %s12, 256, %s427, [#allocation12], 64, 64, 4
        $region56: #{tpu_custom_call.1} parent=11 // pred_fallthru
          _
      $region12: #{tpu_custom_call.1} parent=5 // pred_fallthru
        _
      %p433 = scmp.lt.s32.totalorder %s30, 2
      // Predicated region
      $region57: #{tpu_custom_call.1} parent=5 // pred_check
        %p434 = pneg %p433
      $region58: #{tpu_custom_call.1} parent=5 // pred_check_branch
        %436 = sbr.rel (%p434) target = $region60
      $region59: #{tpu_custom_call.1} parent=5 // pred_region
        // Predicated region
        $region61: #{tpu_custom_call.1} parent=59 // pred_check
          %p437 = pneg %p50
        $region62: #{tpu_custom_call.1} parent=59 // pred_check_branch
          %439 = sbr.rel (%p437) target = $region64
        $region63: #{tpu_custom_call.1} parent=59 // pred_region
          %s440 = sand.u32 %s40, 1
          %s441 = scalar_lea.sflag [#allocation3], %s440
          %s442 = sand.u32 %s40, 1
          %s443 = smul.addr %s442, 8
          %s444 = scalar_lea.vmem [#allocation2], %s443
          %s446 = ssub.s32 128, 128
          %447 = vsyncadd %s441, %s446
          %s448 = smul.addr %s30, 128
          %s449 = scalar_lea.hbm %s0, %s448
          %s451 = sshll.u32 %s444, 4
          %s452 = int_to_ptr.vmem [resolvable:$true] %s451
          %454 = dma.hbm_to_vmem [thread:$0]  %s449, 128, %s452, %s441
        $region64: #{tpu_custom_call.1} parent=59 // pred_fallthru
          _
        // Predicated region
        $region65: #{tpu_custom_call.1} parent=59 // pred_check
          %p455 = pneg %p76
        $region66: #{tpu_custom_call.1} parent=59 // pred_check_branch
          %457 = sbr.rel (%p455) target = $region68
        $region67: #{tpu_custom_call.1} parent=59 // pred_region
          %s458 = sand.u32 %s30, 1
          %s459 = scalar_lea.sflag [#allocation6], %s458
          %s460 = sand.u32 %s66, 1
          %s461 = smul.addr %s460, 8
          %s462 = scalar_lea.vmem [#allocation5], %s461
          %s464 = ssub.s32 128, 128
          %465 = vsyncadd %s459, %s464
          %s466 = smul.addr %s30, 128
          %s467 = scalar_lea.hbm %s1, %s466
          %s469 = sshll.u32 %s462, 4
          %s470 = int_to_ptr.vmem [resolvable:$true] %s469
          %472 = dma.hbm_to_vmem [thread:$0]  %s467, 128, %s470, %s459
        $region68: #{tpu_custom_call.1} parent=59 // pred_fallthru
          _
      $region60: #{tpu_custom_call.1} parent=5 // pred_fallthru
        _
      %p473 = scmp.le.s32.totalorder 1, %s30
      %p474 = scmp.lt.s32.totalorder %s30, 3
      %p475 = pnand %p473, %p474
      %p476 = pneg %p475
      // Predicated region
      $region69: #{tpu_custom_call.1} parent=5 // pred_check
        _
      $region70: #{tpu_custom_call.1} parent=5 // pred_check_branch
        %478 = sbr.rel (%p475) target = $region72
      $region71: #{tpu_custom_call.1} parent=5 // pred_region
        %s479 = ssub.s32 %s30, 1
        %s480 = sand.u32 %s43, 1
        %s481 = scalar_lea.sflag [#allocation3], %s480
        %s482 = sand.u32 %s43, 1
        %s483 = smul.addr %s482, 8
        %s484 = scalar_lea.vmem [#allocation2], %s483
        // Predicated region
        $region73: #{tpu_custom_call.1} parent=71 // pred_check
          %p485 = pneg %p56
        $region74: #{tpu_custom_call.1} parent=71 // pred_check_branch
          %487 = sbr.rel (%p485) target = $region76
        $region75: #{tpu_custom_call.1} parent=71 // pred_region
          %488 = dma.done %s481, 128
        $region76: #{tpu_custom_call.1} parent=71 // pred_fallthru
          _
        %s489 = sand.u32 %s35, 1
        %s490 = scalar_lea.sflag [#allocation6], %s489
        %s491 = sand.u32 %s69, 1
        %s492 = smul.addr %s491, 8
        %s493 = scalar_lea.vmem [#allocation5], %s492
        // Predicated region
        $region77: #{tpu_custom_call.1} parent=71 // pred_check
          %p494 = pneg %p82
        $region78: #{tpu_custom_call.1} parent=71 // pred_check_branch
          %496 = sbr.rel (%p494) target = $region80
        $region79: #{tpu_custom_call.1} parent=71 // pred_region
          %497 = dma.done %s490, 128
        $region80: #{tpu_custom_call.1} parent=71 // pred_fallthru
          _
        // Predicated region
        $region81: #{tpu_custom_call.1} parent=71 // pred_check
          %p498 = pneg %p145
        $region82: #{tpu_custom_call.1} parent=71 // pred_check_branch
          %500 = sbr.rel (%p498) target = $region84
        $region83: #{tpu_custom_call.1} parent=71 // pred_region
          %501 = dma.done [#allocation6], 16
        $region84: #{tpu_custom_call.1} parent=71 // pred_fallthru
          _
        // Predicated region
        $region85: #{tpu_custom_call.1} parent=71 // pred_check
          %p502 = pneg %p166
        $region86: #{tpu_custom_call.1} parent=71 // pred_check_branch
          %504 = sbr.rel (%p502) target = $region88
        $region87: #{tpu_custom_call.1} parent=71 // pred_region
          %505 = dma.done [#allocation9], 16
        $region88: #{tpu_custom_call.1} parent=71 // pred_fallthru
          _
        // Predicated region
        $region89: #{tpu_custom_call.1} parent=71 // pred_check
          %p506 = pneg %p208
        $region90: #{tpu_custom_call.1} parent=71 // pred_check_branch
          %508 = sbr.rel (%p506) target = $region92
        $region91: #{tpu_custom_call.1} parent=71 // pred_region
          %509 = dma.done [#allocation9], 256
        $region92: #{tpu_custom_call.1} parent=71 // pred_fallthru
          _
        // Predicated region
        $region93: #{tpu_custom_call.1} parent=71 // pred_check
          %p510 = pneg %p229
        $region94: #{tpu_custom_call.1} parent=71 // pred_check_branch
          %512 = sbr.rel (%p510) target = $region96
        $region95: #{tpu_custom_call.1} parent=71 // pred_region
          %513 = dma.done [#allocation12], 256
        $region96: #{tpu_custom_call.1} parent=71 // pred_fallthru
          _
        // Predicated region
        $region97: #{tpu_custom_call.1} parent=71 // pred_check
          %p514 = pneg %p313
        $region98: #{tpu_custom_call.1} parent=71 // pred_check_branch
          %516 = sbr.rel (%p514) target = $region100
        $region99: #{tpu_custom_call.1} parent=71 // pred_region
          %517 = dma.done [#allocation12], 256
        $region100: #{tpu_custom_call.1} parent=71 // pred_fallthru
          _
        %s518 = sand.u32 %s43, 1
        %s519 = scalar_lea.sflag [#allocation3], %s518
        %s520 = sand.u32 %s43, 1
        %s521 = smul.addr %s520, 8
        %s522 = scalar_lea.vmem [#allocation2], %s521
        %p523 = pneg %p56
        %p524 = pneg %p53
        %s525 = sand.u32 %s35, 1
        %s526 = scalar_lea.sflag [#allocation6], %s525
        %s527 = sand.u32 %s69, 1
        %s528 = smul.addr %s527, 8
        %s529 = scalar_lea.vmem [#allocation5], %s528
        %p530 = pneg %p82
        %p531 = pneg %p79
        %p532 = pneg %p103
        %p533 = pneg %p100
        %p534 = pneg %p124
        %p535 = pneg %p121
        %p536 = pneg %p145
        %p537 = pneg %p142
        %p538 = pneg %p166
        %p539 = pneg %p163
        %p540 = pneg %p187
        %p541 = pneg %p184
        %p542 = pneg %p208
        %p543 = pneg %p205
        %p544 = pneg %p229
        %p545 = pneg %p226
        %p546 = pneg %p250
        %p547 = pneg %p247
        %p548 = pneg %p271
        %p549 = pneg %p268
        %p550 = pneg %p292
        %p551 = pneg %p289
        %p552 = pneg %p313
        %p553 = pneg %p310
        %p554 = pneg %p339
        %p555 = pneg %p336
        %s556 = sand.u32 %s326, 1
        %s557 = scalar_lea.sflag [#allocation4], %s556
        %s558 = sand.u32 %s326, 1
        %s559 = smul.addr %s558, 8
        %s560 = scalar_lea.vmem [#allocation14], %s559
        %v562 = vld [vmem:[%s484] sm:$0xff]
        %v563 = vld [vmem:[%s493] sm:$0xff]
        %v564 = vld [vmem:[%s2] sm:$0x1]
        %v565 = vld [vmem:[%s3] sm:$0x1]
        %vm566 = vcmask 261120
        %v567 = vsel %vm566, %v562, 0.0
        %568 = vadd.xlane.f32.xlu0 %v567
        %v569 = vpop.xlane.xlu0 %568
        %v570 = vrcp.pop 32.0
        %v571 = vmul.f32 %v569, %v570
        %v572 = vmul.f32 %v562, %v562
        %v573 = vsel %vm566, %v572, 0.0
        %574 = vadd.xlane.f32.xlu0 %v573
        %v575 = vpop.xlane.xlu0 %574
        %v576 = vmul.f32 %v575, %v570
        %v577 = vmul.f32 %v571, %v571
        %v578 = vsub.f32 %v576, %v577
        %v579 = vmax.f32 %v578, 0.0
        %v580 = vsub.f32 %v562, %v571
        %v581 = vadd.f32 %v579, 1e-05
        %v582 = vrsqrt.pop %v581
        %v583 = vmul.f32 %v580, %v582
        %v585 = vlaneseq
        %v586 = vshrl.u32 %v585, 7
        %v587 = vsub.s32 0, %v586
        %v588 = vrot.slane %v564, %v587
        %v590 = vmul.f32 %v583, %v588
        %v592 = vlaneseq
        %v593 = vshrl.u32 %v592, 7
        %v594 = vsub.s32 0, %v593
        %v595 = vrot.slane %v565, %v594
        %v597 = vadd.f32 %v590, %v595
        %v598 = vpack.c.bf16 %v597, %v597
        %v599 = vld [vmem:[#allocation7] sm:$0x1]
        %v600 = vld [vmem:[#allocation8] sm:$0x1]
        %v601 = vsel %vm566, %v563, 0.0
        %602 = vadd.xlane.f32.xlu0 %v601
        %v603 = vpop.xlane.xlu0 %602
        %v604 = vmul.f32 %v603, %v570
        %v605 = vmul.f32 %v563, %v563
        %v606 = vsel %vm566, %v605, 0.0
        %607 = vadd.xlane.f32.xlu0 %v606
        %v608 = vpop.xlane.xlu0 %607
        %v609 = vmul.f32 %v608, %v570
        %v610 = vmul.f32 %v604, %v604
        %v611 = vsub.f32 %v609, %v610
        %v612 = vmax.f32 %v611, 0.0
        %v613 = vsub.f32 %v563, %v604
        %v614 = vadd.f32 %v612, 1e-05
        %v615 = vrsqrt.pop %v614
        %v616 = vmul.f32 %v613, %v615
        %v618 = vlaneseq
        %v619 = vshrl.u32 %v618, 7
        %v620 = vsub.s32 0, %v619
        %v621 = vrot.slane %v599, %v620
        %v623 = vmul.f32 %v616, %v621
        %v625 = vlaneseq
        %v626 = vshrl.u32 %v625, 7
        %v627 = vsub.s32 0, %v626
        %v628 = vrot.slane %v600, %v627
        %v630 = vadd.f32 %v623, %v628
        %v631 = vpack.c.bf16 %v630, %v630
        %v632 = vld [vmem:[%s6] sm:$0xf]
        %v633 = vld [vmem:[%s6 + $0x4] sm:$0xf]
        %v634 = vld [vmem:[%s6 + $0x8] sm:$0xf]
        %v635 = vld [vmem:[%s6 + $0xc] sm:$0xf]
        %v640 = vunpack.c.l.b16 %v632
        %v641 = vunpack.c.l.b16 %v633
        %v642 = vunpack.c.l.b16 %v634
        %v643 = vunpack.c.l.b16 %v635
        %v644 = vpack.c.b16 %v641, %v640
        %v645 = vpack.c.b16 %v643, %v642
        %v649 = vsel %vm566, %v598, 0
        %651 = vmatprep.subr.bf16.mxu0 0
        %652 = vmatpush1.bf16.msra.mxu0 %v644
        %653 = vmatprep.subr.bf16.mxu0 0
        %654 = vmatpush1.bf16.msra.mxu0 %v645
        %655 = vmatprep.subr.bf16.mxu0 0
        %656 = vmatpush1.bf16.msra.mxu0 0
        %657 = vmatprep.subr.bf16.mxu0 0
        %658 = vmatpush1.bf16.msra.mxu0 0
        %659 = vmatprep.subr.bf16.mxu0 0
        %660 = vmatpush1.bf16.msra.mxu0 0
        %661 = vmatprep.subr.bf16.mxu0 0
        %662 = vmatpush1.bf16.msra.mxu0 0
        %663 = vmatprep.subr.bf16.mxu0 0
        %664 = vmatpush1.bf16.msra.mxu0 0
        %665 = vmatprep.subr.bf16.mxu0 0
        %666 = vmatpush1.bf16.msra.mxu0 0
        %667 = vmatprep.subr.bf16.mxu0 0
        %668 = vmatpush1.bf16.msra.mxu0 0
        %669 = vmatprep.subr.bf16.mxu0 0
        %670 = vmatpush1.bf16.msra.mxu0 0
        %671 = vmatprep.subr.bf16.mxu0 0
        %672 = vmatpush1.bf16.msra.mxu0 0
        %673 = vmatprep.subr.bf16.mxu0 0
        %674 = vmatpush1.bf16.msra.mxu0 0
        %675 = vmatprep.subr.bf16.mxu0 0
        %676 = vmatpush1.bf16.msra.mxu0 0
        %677 = vmatprep.subr.bf16.mxu0 0
        %678 = vmatpush1.bf16.msra.mxu0 0
        %679 = vmatprep.subr.bf16.mxu0 0
        %680 = vmatpush1.bf16.msra.mxu0 0
        %681 = vmatprep.subr.bf16.mxu0 0
        %682 = vmatpush1.bf16.msra.mxu0 0
        %683 = vmatprep.mubr.bf16.mxu0 0
        %684 = vmatmul.mubr.bf16.gmra.mrb[0].mxu0 %v649
        %v685 = vpop.f32.mrb[0].mxu0
        %v686 = vadd.f32 0.0, %v685
        %v687 = vpop.f32.mrb[0].mxu0
        %v688 = vpop.f32.mrb[0].mxu0
        %v689 = vpop.f32.mrb[0].mxu0
        %690 = vdwg.mxu0
        %v691 = vpack.c.bf16 %v686, %v686
        %v692 = vld [vmem:[#allocation10] sm:$0xf]
        %v693 = vld [vmem:[#allocation10 + $0x4] sm:$0xf]
        %v694 = vld [vmem:[#allocation10 + $0x8] sm:$0xf]
        %v695 = vld [vmem:[#allocation10 + $0xc] sm:$0xf]
        %v700 = vunpack.c.l.b16 %v692
        %v701 = vunpack.c.l.b16 %v693
        %v702 = vunpack.c.l.b16 %v694
        %v703 = vunpack.c.l.b16 %v695
        %v704 = vpack.c.b16 %v701, %v700
        %v705 = vpack.c.b16 %v703, %v702
        %v709 = vsel %vm566, %v631, 0
        %711 = vmatprep.subr.bf16.mxu0 0
        %712 = vmatpush1.bf16.msra.mxu0 %v704
        %713 = vmatprep.subr.bf16.mxu0 0
        %714 = vmatpush1.bf16.msra.mxu0 %v705
        %715 = vmatprep.subr.bf16.mxu0 0
        %716 = vmatpush1.bf16.msra.mxu0 0
        %717 = vmatprep.subr.bf16.mxu0 0
        %718 = vmatpush1.bf16.msra.mxu0 0
        %719 = vmatprep.subr.bf16.mxu0 0
        %720 = vmatpush1.bf16.msra.mxu0 0
        %721 = vmatprep.subr.bf16.mxu0 0
        %722 = vmatpush1.bf16.msra.mxu0 0
        %723 = vmatprep.subr.bf16.mxu0 0
        %724 = vmatpush1.bf16.msra.mxu0 0
        %725 = vmatprep.subr.bf16.mxu0 0
        %726 = vmatpush1.bf16.msra.mxu0 0
        %727 = vmatprep.subr.bf16.mxu0 0
        %728 = vmatpush1.bf16.msra.mxu0 0
        %729 = vmatprep.subr.bf16.mxu0 0
        %730 = vmatpush1.bf16.msra.mxu0 0
        %731 = vmatprep.subr.bf16.mxu0 0
        %732 = vmatpush1.bf16.msra.mxu0 0
        %733 = vmatprep.subr.bf16.mxu0 0
        %734 = vmatpush1.bf16.msra.mxu0 0
        %735 = vmatprep.subr.bf16.mxu0 0
        %736 = vmatpush1.bf16.msra.mxu0 0
        %737 = vmatprep.subr.bf16.mxu0 0
        %738 = vmatpush1.bf16.msra.mxu0 0
        %739 = vmatprep.subr.bf16.mxu0 0
        %740 = vmatpush1.bf16.msra.mxu0 0
        %741 = vmatprep.subr.bf16.mxu0 0
        %742 = vmatpush1.bf16.msra.mxu0 0
        %743 = vmatprep.mubr.bf16.mxu0 0
        %744 = vmatmul.mubr.bf16.gmra.mrb[0].mxu0 %v709
        %v745 = vpop.f32.mrb[0].mxu0
        %v746 = vadd.f32 0.0, %v745
        %v747 = vpop.f32.mrb[0].mxu0
        %v748 = vpop.f32.mrb[0].mxu0
        %v749 = vpop.f32.mrb[0].mxu0
        %750 = vdwg.mxu0
        %v751 = vpack.c.bf16 %v746, %v746
        %v752 = vld [vmem:[#allocation11] sm:$0xf]
        %v753 = vld [vmem:[#allocation11 + $0x4] sm:$0xf]
        %v754 = vld [vmem:[#allocation11 + $0x8] sm:$0xf]
        %v755 = vld [vmem:[#allocation11 + $0xc] sm:$0xf]
        %v760 = vunpack.c.l.b16 %v752
        %v761 = vunpack.c.l.b16 %v753
        %v762 = vunpack.c.l.b16 %v754
        %v763 = vunpack.c.l.b16 %v755
        %v764 = vpack.c.b16 %v761, %v760
        %v765 = vpack.c.b16 %v763, %v762
        %768 = vmatprep.subr.bf16.mxu0 0
        %769 = vmatpush1.bf16.msra.mxu0 %v764
        %770 = vmatprep.subr.bf16.mxu0 0
        %771 = vmatpush1.bf16.msra.mxu0 %v765
        %772 = vmatprep.subr.bf16.mxu0 0
        %773 = vmatpush1.bf16.msra.mxu0 0
        %774 = vmatprep.subr.bf16.mxu0 0
        %775 = vmatpush1.bf16.msra.mxu0 0
        %776 = vmatprep.subr.bf16.mxu0 0
        %777 = vmatpush1.bf16.msra.mxu0 0
        %778 = vmatprep.subr.bf16.mxu0 0
        %779 = vmatpush1.bf16.msra.mxu0 0
        %780 = vmatprep.subr.bf16.mxu0 0
        %781 = vmatpush1.bf16.msra.mxu0 0
        %782 = vmatprep.subr.bf16.mxu0 0
        %783 = vmatpush1.bf16.msra.mxu0 0
        %784 = vmatprep.subr.bf16.mxu0 0
        %785 = vmatpush1.bf16.msra.mxu0 0
        %786 = vmatprep.subr.bf16.mxu0 0
        %787 = vmatpush1.bf16.msra.mxu0 0
        %788 = vmatprep.subr.bf16.mxu0 0
        %789 = vmatpush1.bf16.msra.mxu0 0
        %790 = vmatprep.subr.bf16.mxu0 0
        %791 = vmatpush1.bf16.msra.mxu0 0
        %792 = vmatprep.subr.bf16.mxu0 0
        %793 = vmatpush1.bf16.msra.mxu0 0
        %794 = vmatprep.subr.bf16.mxu0 0
        %795 = vmatpush1.bf16.msra.mxu0 0
        %796 = vmatprep.subr.bf16.mxu0 0
        %797 = vmatpush1.bf16.msra.mxu0 0
        %798 = vmatprep.subr.bf16.mxu0 0
        %799 = vmatpush1.bf16.msra.mxu0 0
        %800 = vmatprep.mubr.bf16.mxu0 0
        %801 = vmatmul.mubr.bf16.gmra.mrb[0].mxu0 %v709
        %v802 = vpop.f32.mrb[0].mxu0
        %v803 = vadd.f32 0.0, %v802
        %v804 = vpop.f32.mrb[0].mxu0
        %v805 = vpop.f32.mrb[0].mxu0
        %v806 = vpop.f32.mrb[0].mxu0
        %807 = vdwg.mxu0
        %v808 = vpack.c.bf16 %v803, %v803
        %810 = vrot.lane.b32.xlu0 %v691, 120
        %v811 = vpop.permute.xlu0 %810
        %812 = vrot.lane.b32.xlu0 %v691, 112
        %v813 = vpop.permute.xlu0 %812
        %814 = vrot.lane.b32.xlu0 %v691, 104
        %v815 = vpop.permute.xlu0 %814
        %817 = vrot.lane.b32.xlu0 %v751, 120
        %v818 = vpop.permute.xlu0 %817
        %819 = vrot.lane.b32.xlu0 %v751, 112
        %v820 = vpop.permute.xlu0 %819
        %821 = vrot.lane.b32.xlu0 %v751, 104
        %v822 = vpop.permute.xlu0 %821
        %824 = vrot.lane.b32.xlu0 %v808, 120
        %v825 = vpop.permute.xlu0 %824
        %826 = vrot.lane.b32.xlu0 %v808, 112
        %v827 = vpop.permute.xlu0 %826
        %828 = vrot.lane.b32.xlu0 %v808, 104
        %v829 = vpop.permute.xlu0 %828
        %vm830 = vcmask 64512
        %v832 = vsel %vm830, %v691, 0
        %v835 = vsel %vm830, %v751, 0
        %837 = vmatprep.subr.bf16.mxu0 0
        %838 = vmatpush1.bf16.xpose.msra.mxu0 %v835
        %839 = vmatprep.subr.bf16.mxu0 0
        %840 = vmatpush1.bf16.xpose.msra.mxu0 0
        %841 = vmatprep.subr.bf16.mxu0 0
        %842 = vmatpush1.bf16.xpose.msra.mxu0 0
        %843 = vmatprep.subr.bf16.mxu0 0
        %844 = vmatpush1.bf16.xpose.msra.mxu0 0
        %845 = vmatprep.subr.bf16.mxu0 0
        %846 = vmatpush1.bf16.xpose.msra.mxu0 0
        %847 = vmatprep.subr.bf16.mxu0 0
        %848 = vmatpush1.bf16.xpose.msra.mxu0 0
        %849 = vmatprep.subr.bf16.mxu0 0
        %850 = vmatpush1.bf16.xpose.msra.mxu0 0
        %851 = vmatprep.subr.bf16.mxu0 0
        %852 = vmatpush1.bf16.xpose.msra.mxu0 0
        %853 = vmatprep.subr.bf16.mxu0 0
        %854 = vmatpush1.bf16.xpose.msra.mxu0 0
        %855 = vmatprep.subr.bf16.mxu0 0
        %856 = vmatpush1.bf16.xpose.msra.mxu0 0
        %857 = vmatprep.subr.bf16.mxu0 0
        %858 = vmatpush1.bf16.xpose.msra.mxu0 0
        %859 = vmatprep.subr.bf16.mxu0 0
        %860 = vmatpush1.bf16.xpose.msra.mxu0 0
        %861 = vmatprep.subr.bf16.mxu0 0
        %862 = vmatpush1.bf16.xpose.msra.mxu0 0
        %863 = vmatprep.subr.bf16.mxu0 0
        %864 = vmatpush1.bf16.xpose.msra.mxu0 0
        %865 = vmatprep.subr.bf16.mxu0 0
        %866 = vmatpush1.bf16.xpose.msra.mxu0 0
        %867 = vmatprep.subr.bf16.mxu0 0
        %868 = vmatpush1.bf16.xpose.msra.mxu0 0
        %869 = vmatprep.mubr.bf16.mxu0 0
        %870 = vmatmul.mubr.bf16.gmra.mrb[0].mxu0 %v832
        %v871 = vpop.f32.mrb[0].mxu0
        %v872 = vadd.f32 0.0, %v871
        %v873 = vpop.f32.mrb[0].mxu0
        %v874 = vpop.f32.mrb[0].mxu0
        %v875 = vpop.f32.mrb[0].mxu0
        %876 = vdwg.mxu0
        %v878 = vsel %vm830, %v811, 0
        %v881 = vsel %vm830, %v818, 0
        %883 = vmatprep.subr.bf16.mxu0 0
        %884 = vmatpush1.bf16.xpose.msra.mxu0 %v881
        %885 = vmatprep.subr.bf16.mxu0 0
        %886 = vmatpush1.bf16.xpose.msra.mxu0 0
        %887 = vmatprep.subr.bf16.mxu0 0
        %888 = vmatpush1.bf16.xpose.msra.mxu0 0
        %889 = vmatprep.subr.bf16.mxu0 0
        %890 = vmatpush1.bf16.xpose.msra.mxu0 0
        %891 = vmatprep.subr.bf16.mxu0 0
        %892 = vmatpush1.bf16.xpose.msra.mxu0 0
        %893 = vmatprep.subr.bf16.mxu0 0
        %894 = vmatpush1.bf16.xpose.msra.mxu0 0
        %895 = vmatprep.subr.bf16.mxu0 0
        %896 = vmatpush1.bf16.xpose.msra.mxu0 0
        %897 = vmatprep.subr.bf16.mxu0 0
        %898 = vmatpush1.bf16.xpose.msra.mxu0 0
        %899 = vmatprep.subr.bf16.mxu0 0
        %900 = vmatpush1.bf16.xpose.msra.mxu0 0
        %901 = vmatprep.subr.bf16.mxu0 0
        %902 = vmatpush1.bf16.xpose.msra.mxu0 0
        %903 = vmatprep.subr.bf16.mxu0 0
        %904 = vmatpush1.bf16.xpose.msra.mxu0 0
        %905 = vmatprep.subr.bf16.mxu0 0
        %906 = vmatpush1.bf16.xpose.msra.mxu0 0
        %907 = vmatprep.subr.bf16.mxu0 0
        %908 = vmatpush1.bf16.xpose.msra.mxu0 0
        %909 = vmatprep.subr.bf16.mxu0 0
        %910 = vmatpush1.bf16.xpose.msra.mxu0 0
        %911 = vmatprep.subr.bf16.mxu0 0
        %912 = vmatpush1.bf16.xpose.msra.mxu0 0
        %913 = vmatprep.subr.bf16.mxu0 0
        %914 = vmatpush1.bf16.xpose.msra.mxu0 0
        %915 = vmatprep.mubr.bf16.mxu0 0
        %916 = vmatmul.mubr.bf16.gmra.mrb[0].mxu0 %v878
        %v917 = vpop.f32.mrb[0].mxu0
        %v918 = vadd.f32 0.0, %v917
        %v919 = vpop.f32.mrb[0].mxu0
        %v920 = vpop.f32.mrb[0].mxu0
        %v921 = vpop.f32.mrb[0].mxu0
        %922 = vdwg.mxu0
        %v924 = vsel %vm830, %v813, 0
        %v927 = vsel %vm830, %v820, 0
        %929 = vmatprep.subr.bf16.mxu0 0
        %930 = vmatpush1.bf16.xpose.msra.mxu0 %v927
        %931 = vmatprep.subr.bf16.mxu0 0
        %932 = vmatpush1.bf16.xpose.msra.mxu0 0
        %933 = vmatprep.subr.bf16.mxu0 0
        %934 = vmatpush1.bf16.xpose.msra.mxu0 0
        %935 = vmatprep.subr.bf16.mxu0 0
        %936 = vmatpush1.bf16.xpose.msra.mxu0 0
        %937 = vmatprep.subr.bf16.mxu0 0
        %938 = vmatpush1.bf16.xpose.msra.mxu0 0
        %939 = vmatprep.subr.bf16.mxu0 0
        %940 = vmatpush1.bf16.xpose.msra.mxu0 0
        %941 = vmatprep.subr.bf16.mxu0 0
        %942 = vmatpush1.bf16.xpose.msra.mxu0 0
        %943 = vmatprep.subr.bf16.mxu0 0
        %944 = vmatpush1.bf16.xpose.msra.mxu0 0
        %945 = vmatprep.subr.bf16.mxu0 0
        %946 = vmatpush1.bf16.xpose.msra.mxu0 0
        %947 = vmatprep.subr.bf16.mxu0 0
        %948 = vmatpush1.bf16.xpose.msra.mxu0 0
        %949 = vmatprep.subr.bf16.mxu0 0
        %950 = vmatpush1.bf16.xpose.msra.mxu0 0
        %951 = vmatprep.subr.bf16.mxu0 0
        %952 = vmatpush1.bf16.xpose.msra.mxu0 0
        %953 = vmatprep.subr.bf16.mxu0 0
        %954 = vmatpush1.bf16.xpose.msra.mxu0 0
        %955 = vmatprep.subr.bf16.mxu0 0
        %956 = vmatpush1.bf16.xpose.msra.mxu0 0
        %957 = vmatprep.subr.bf16.mxu0 0
        %958 = vmatpush1.bf16.xpose.msra.mxu0 0
        %959 = vmatprep.subr.bf16.mxu0 0
        %960 = vmatpush1.bf16.xpose.msra.mxu0 0
        %961 = vmatprep.mubr.bf16.mxu0 0
        %962 = vmatmul.mubr.bf16.gmra.mrb[0].mxu0 %v924
        %v963 = vpop.f32.mrb[0].mxu0
        %v964 = vadd.f32 0.0, %v963
        %v965 = vpop.f32.mrb[0].mxu0
        %v966 = vpop.f32.mrb[0].mxu0
        %v967 = vpop.f32.mrb[0].mxu0
        %968 = vdwg.mxu0
        %v970 = vsel %vm830, %v815, 0
        %v973 = vsel %vm830, %v822, 0
        %975 = vmatprep.subr.bf16.mxu0 0
        %976 = vmatpush1.bf16.xpose.msra.mxu0 %v973
        %977 = vmatprep.subr.bf16.mxu0 0
        %978 = vmatpush1.bf16.xpose.msra.mxu0 0
        %979 = vmatprep.subr.bf16.mxu0 0
        %980 = vmatpush1.bf16.xpose.msra.mxu0 0
        %981 = vmatprep.subr.bf16.mxu0 0
        %982 = vmatpush1.bf16.xpose.msra.mxu0 0
        %983 = vmatprep.subr.bf16.mxu0 0
        %984 = vmatpush1.bf16.xpose.msra.mxu0 0
        %985 = vmatprep.subr.bf16.mxu0 0
        %986 = vmatpush1.bf16.xpose.msra.mxu0 0
        %987 = vmatprep.subr.bf16.mxu0 0
        %988 = vmatpush1.bf16.xpose.msra.mxu0 0
        %989 = vmatprep.subr.bf16.mxu0 0
        %990 = vmatpush1.bf16.xpose.msra.mxu0 0
        %991 = vmatprep.subr.bf16.mxu0 0
        %992 = vmatpush1.bf16.xpose.msra.mxu0 0
        %993 = vmatprep.subr.bf16.mxu0 0
        %994 = vmatpush1.bf16.xpose.msra.mxu0 0
        %995 = vmatprep.subr.bf16.mxu0 0
        %996 = vmatpush1.bf16.xpose.msra.mxu0 0
        %997 = vmatprep.subr.bf16.mxu0 0
        %998 = vmatpush1.bf16.xpose.msra.mxu0 0
        %999 = vmatprep.subr.bf16.mxu0 0
        %1000 = vmatpush1.bf16.xpose.msra.mxu0 0
        %1001 = vmatprep.subr.bf16.mxu0 0
        %1002 = vmatpush1.bf16.xpose.msra.mxu0 0
        %1003 = vmatprep.subr.bf16.mxu0 0
        %1004 = vmatpush1.bf16.xpose.msra.mxu0 0
        %1005 = vmatprep.subr.bf16.mxu0 0
        %1006 = vmatpush1.bf16.xpose.msra.mxu0 0
        %1007 = vmatprep.mubr.bf16.mxu0 0
        %1008 = vmatmul.mubr.bf16.gmra.mrb[0].mxu0 %v970
        %v1009 = vpop.f32.mrb[0].mxu0
        %v1010 = vadd.f32 0.0, %v1009
        %v1011 = vpop.f32.mrb[0].mxu0
        %v1012 = vpop.f32.mrb[0].mxu0
        %v1013 = vpop.f32.mrb[0].mxu0
        %1014 = vdwg.mxu0
        %v1015 = vsel %vm830, %v872, -inf
        %1016 = vmax.xlane.f32.xlu0 %v1015
        %v1017 = vpop.xlane.xlu0 %1016
        %v1018 = vsel %vm830, %v918, -inf
        %1019 = vmax.xlane.f32.xlu0 %v1018
        %v1020 = vpop.xlane.xlu0 %1019
        %v1021 = vsel %vm830, %v964, -inf
        %1022 = vmax.xlane.f32.xlu0 %v1021
        %v1023 = vpop.xlane.xlu0 %1022
        %v1024 = vsel %vm830, %v1010, -inf
        %1025 = vmax.xlane.f32.xlu0 %v1024
        %v1026 = vpop.xlane.xlu0 %1025
        %v1027 = vsub.f32 %v872, %v1017
        %v1028 = vsub.f32 %v918, %v1020
        %v1029 = vsub.f32 %v964, %v1023
        %v1030 = vsub.f32 %v1010, %v1026
        %v1031 = vmul.f32 %v1027, 1.442695
        %v1032 = vpow.pop %v1031
        %v1033 = vmul.f32 %v1028, 1.442695
        %v1034 = vpow.pop %v1033
        %v1035 = vmul.f32 %v1029, 1.442695
        %v1036 = vpow.pop %v1035
        %v1037 = vmul.f32 %v1030, 1.442695
        %v1038 = vpow.pop %v1037
        %v1039 = vsel %vm830, %v1032, 0.0
        %1040 = vadd.xlane.f32.xlu0 %v1039
        %v1041 = vpop.xlane.xlu0 %1040
        %v1042 = vsel %vm830, %v1034, 0.0
        %1043 = vadd.xlane.f32.xlu0 %v1042
        %v1044 = vpop.xlane.xlu0 %1043
        %v1045 = vsel %vm830, %v1036, 0.0
        %1046 = vadd.xlane.f32.xlu0 %v1045
        %v1047 = vpop.xlane.xlu0 %1046
        %v1048 = vsel %vm830, %v1038, 0.0
        %1049 = vadd.xlane.f32.xlu0 %v1048
        %v1050 = vpop.xlane.xlu0 %1049
        %v1051 = vrcp.pop %v1041
        %v1052 = vrcp.pop %v1044
        %v1053 = vrcp.pop %v1047
        %v1054 = vrcp.pop %v1050
        %v1055 = vmul.f32 %v1032, %v1051
        %v1056 = vmul.f32 %v1034, %v1052
        %v1057 = vmul.f32 %v1036, %v1053
        %v1058 = vmul.f32 %v1038, %v1054
        %v1059 = vpack.c.bf16 %v1055, %v1055
        %v1060 = vpack.c.bf16 %v1056, %v1056
        %v1061 = vpack.c.bf16 %v1057, %v1057
        %v1062 = vpack.c.bf16 %v1058, %v1058
        %v1064 = vsel %vm830, %v1059, 0
        %vm1066 = vcmask 1043456
        %v1068 = vsel %vm1066, %v808, 0
        %1070 = vmatprep.subr.bf16.mxu0 0
        %1071 = vmatpush1.bf16.msra.mxu0 %v1068
        %1072 = vmatprep.subr.bf16.mxu0 0
        %1073 = vmatpush1.bf16.msra.mxu0 0
        %1074 = vmatprep.subr.bf16.mxu0 0
        %1075 = vmatpush1.bf16.msra.mxu0 0
        %1076 = vmatprep.subr.bf16.mxu0 0
        %1077 = vmatpush1.bf16.msra.mxu0 0
        %1078 = vmatprep.subr.bf16.mxu0 0
        %1079 = vmatpush1.bf16.msra.mxu0 0
        %1080 = vmatprep.subr.bf16.mxu0 0
        %1081 = vmatpush1.bf16.msra.mxu0 0
        %1082 = vmatprep.subr.bf16.mxu0 0
        %1083 = vmatpush1.bf16.msra.mxu0 0
        %1084 = vmatprep.subr.bf16.mxu0 0
        %1085 = vmatpush1.bf16.msra.mxu0 0
        %1086 = vmatprep.subr.bf16.mxu0 0
        %1087 = vmatpush1.bf16.msra.mxu0 0
        %1088 = vmatprep.subr.bf16.mxu0 0
        %1089 = vmatpush1.bf16.msra.mxu0 0
        %1090 = vmatprep.subr.bf16.mxu0 0
        %1091 = vmatpush1.bf16.msra.mxu0 0
        %1092 = vmatprep.subr.bf16.mxu0 0
        %1093 = vmatpush1.bf16.msra.mxu0 0
        %1094 = vmatprep.subr.bf16.mxu0 0
        %1095 = vmatpush1.bf16.msra.mxu0 0
        %1096 = vmatprep.subr.bf16.mxu0 0
        %1097 = vmatpush1.bf16.msra.mxu0 0
        %1098 = vmatprep.subr.bf16.mxu0 0
        %1099 = vmatpush1.bf16.msra.mxu0 0
        %1100 = vmatprep.subr.bf16.mxu0 0
        %1101 = vmatpush1.bf16.msra.mxu0 0
        %1102 = vmatprep.mubr.bf16.mxu0 0
        %1103 = vmatmul.mubr.bf16.gmra.mrb[0].mxu0 %v1064
        %v1104 = vpop.f32.mrb[0].mxu0
        %v1105 = vadd.f32 0.0, %v1104
        %v1106 = vpop.f32.mrb[0].mxu0
        %v1107 = vpop.f32.mrb[0].mxu0
        %v1108 = vpop.f32.mrb[0].mxu0
        %1109 = vdwg.mxu0
        %v1111 = vsel %vm830, %v1060, 0
        %v1114 = vsel %vm1066, %v825, 0
        %1116 = vmatprep.subr.bf16.mxu0 0
        %1117 = vmatpush1.bf16.msra.mxu0 %v1114
        %1118 = vmatprep.subr.bf16.mxu0 0
        %1119 = vmatpush1.bf16.msra.mxu0 0
        %1120 = vmatprep.subr.bf16.mxu0 0
        %1121 = vmatpush1.bf16.msra.mxu0 0
        %1122 = vmatprep.subr.bf16.mxu0 0
        %1123 = vmatpush1.bf16.msra.mxu0 0
        %1124 = vmatprep.subr.bf16.mxu0 0
        %1125 = vmatpush1.bf16.msra.mxu0 0
        %1126 = vmatprep.subr.bf16.mxu0 0
        %1127 = vmatpush1.bf16.msra.mxu0 0
        %1128 = vmatprep.subr.bf16.mxu0 0
        %1129 = vmatpush1.bf16.msra.mxu0 0
        %1130 = vmatprep.subr.bf16.mxu0 0
        %1131 = vmatpush1.bf16.msra.mxu0 0
        %1132 = vmatprep.subr.bf16.mxu0 0
        %1133 = vmatpush1.bf16.msra.mxu0 0
        %1134 = vmatprep.subr.bf16.mxu0 0
        %1135 = vmatpush1.bf16.msra.mxu0 0
        %1136 = vmatprep.subr.bf16.mxu0 0
        %1137 = vmatpush1.bf16.msra.mxu0 0
        %1138 = vmatprep.subr.bf16.mxu0 0
        %1139 = vmatpush1.bf16.msra.mxu0 0
        %1140 = vmatprep.subr.bf16.mxu0 0
        %1141 = vmatpush1.bf16.msra.mxu0 0
        %1142 = vmatprep.subr.bf16.mxu0 0
        %1143 = vmatpush1.bf16.msra.mxu0 0
        %1144 = vmatprep.subr.bf16.mxu0 0
        %1145 = vmatpush1.bf16.msra.mxu0 0
        %1146 = vmatprep.subr.bf16.mxu0 0
        %1147 = vmatpush1.bf16.msra.mxu0 0
        %1148 = vmatprep.mubr.bf16.mxu0 0
        %1149 = vmatmul.mubr.bf16.gmra.mrb[0].mxu0 %v1111
        %v1150 = vpop.f32.mrb[0].mxu0
        %v1151 = vadd.f32 0.0, %v1150
        %v1152 = vpop.f32.mrb[0].mxu0
        %v1153 = vpop.f32.mrb[0].mxu0
        %v1154 = vpop.f32.mrb[0].mxu0
        %1155 = vdwg.mxu0
        %v1157 = vsel %vm830, %v1061, 0
        %v1160 = vsel %vm1066, %v827, 0
        %1162 = vmatprep.subr.bf16.mxu0 0
        %1163 = vmatpush1.bf16.msra.mxu0 %v1160
        %1164 = vmatprep.subr.bf16.mxu0 0
        %1165 = vmatpush1.bf16.msra.mxu0 0
        %1166 = vmatprep.subr.bf16.mxu0 0
        %1167 = vmatpush1.bf16.msra.mxu0 0
        %1168 = vmatprep.subr.bf16.mxu0 0
        %1169 = vmatpush1.bf16.msra.mxu0 0
        %1170 = vmatprep.subr.bf16.mxu0 0
        %1171 = vmatpush1.bf16.msra.mxu0 0
        %1172 = vmatprep.subr.bf16.mxu0 0
        %1173 = vmatpush1.bf16.msra.mxu0 0
        %1174 = vmatprep.subr.bf16.mxu0 0
        %1175 = vmatpush1.bf16.msra.mxu0 0
        %1176 = vmatprep.subr.bf16.mxu0 0
        %1177 = vmatpush1.bf16.msra.mxu0 0
        %1178 = vmatprep.subr.bf16.mxu0 0
        %1179 = vmatpush1.bf16.msra.mxu0 0
        %1180 = vmatprep.subr.bf16.mxu0 0
        %1181 = vmatpush1.bf16.msra.mxu0 0
        %1182 = vmatprep.subr.bf16.mxu0 0
        %1183 = vmatpush1.bf16.msra.mxu0 0
        %1184 = vmatprep.subr.bf16.mxu0 0
        %1185 = vmatpush1.bf16.msra.mxu0 0
        %1186 = vmatprep.subr.bf16.mxu0 0
        %1187 = vmatpush1.bf16.msra.mxu0 0
        %1188 = vmatprep.subr.bf16.mxu0 0
        %1189 = vmatpush1.bf16.msra.mxu0 0
        %1190 = vmatprep.subr.bf16.mxu0 0
        %1191 = vmatpush1.bf16.msra.mxu0 0
        %1192 = vmatprep.subr.bf16.mxu0 0
        %1193 = vmatpush1.bf16.msra.mxu0 0
        %1194 = vmatprep.mubr.bf16.mxu0 0
        %1195 = vmatmul.mubr.bf16.gmra.mrb[0].mxu0 %v1157
        %v1196 = vpop.f32.mrb[0].mxu0
        %v1197 = vadd.f32 0.0, %v1196
        %v1198 = vpop.f32.mrb[0].mxu0
        %v1199 = vpop.f32.mrb[0].mxu0
        %v1200 = vpop.f32.mrb[0].mxu0
        %1201 = vdwg.mxu0
        %v1203 = vsel %vm830, %v1062, 0
        %v1206 = vsel %vm1066, %v829, 0
        %1208 = vmatprep.subr.bf16.mxu0 0
        %1209 = vmatpush1.bf16.msra.mxu0 %v1206
        %1210 = vmatprep.subr.bf16.mxu0 0
        %1211 = vmatpush1.bf16.msra.mxu0 0
        %1212 = vmatprep.subr.bf16.mxu0 0
        %1213 = vmatpush1.bf16.msra.mxu0 0
        %1214 = vmatprep.subr.bf16.mxu0 0
        %1215 = vmatpush1.bf16.msra.mxu0 0
        %1216 = vmatprep.subr.bf16.mxu0 0
        %1217 = vmatpush1.bf16.msra.mxu0 0
        %1218 = vmatprep.subr.bf16.mxu0 0
        %1219 = vmatpush1.bf16.msra.mxu0 0
        %1220 = vmatprep.subr.bf16.mxu0 0
        %1221 = vmatpush1.bf16.msra.mxu0 0
        %1222 = vmatprep.subr.bf16.mxu0 0
        %1223 = vmatpush1.bf16.msra.mxu0 0
        %1224 = vmatprep.subr.bf16.mxu0 0
        %1225 = vmatpush1.bf16.msra.mxu0 0
        %1226 = vmatprep.subr.bf16.mxu0 0
        %1227 = vmatpush1.bf16.msra.mxu0 0
        %1228 = vmatprep.subr.bf16.mxu0 0
        %1229 = vmatpush1.bf16.msra.mxu0 0
        %1230 = vmatprep.subr.bf16.mxu0 0
        %1231 = vmatpush1.bf16.msra.mxu0 0
        %1232 = vmatprep.subr.bf16.mxu0 0
        %1233 = vmatpush1.bf16.msra.mxu0 0
        %1234 = vmatprep.subr.bf16.mxu0 0
        %1235 = vmatpush1.bf16.msra.mxu0 0
        %1236 = vmatprep.subr.bf16.mxu0 0
        %1237 = vmatpush1.bf16.msra.mxu0 0
        %1238 = vmatprep.subr.bf16.mxu0 0
        %1239 = vmatpush1.bf16.msra.mxu0 0
        %1240 = vmatprep.mubr.bf16.mxu0 0
        %1241 = vmatmul.mubr.bf16.gmra.mrb[0].mxu0 %v1203
        %v1242 = vpop.f32.mrb[0].mxu0
        %v1243 = vadd.f32 0.0, %v1242
        %v1244 = vpop.f32.mrb[0].mxu0
        %v1245 = vpop.f32.mrb[0].mxu0
        %v1246 = vpop.f32.mrb[0].mxu0
        %1247 = vdwg.mxu0
        %v1248 = vpack.c.bf16 %v1105, %v1105
        %v1249 = vpack.c.bf16 %v1151, %v1151
        %v1250 = vpack.c.bf16 %v1197, %v1197
        %v1251 = vpack.c.bf16 %v1243, %v1243
        %1253 = vrot.lane.b32.xlu0 %v1249, 8
        %v1254 = vpop.permute.xlu0 %1253
        %1256 = vrot.lane.b32.xlu0 %v1250, 16
        %v1257 = vpop.permute.xlu0 %1256
        %1259 = vrot.lane.b32.xlu0 %v1251, 24
        %v1260 = vpop.permute.xlu0 %1259
        %v1263 = vsel %vm830, %v1248, %v1254
        %vm1264 = vcmask 130048
        %v1266 = vsel %vm1264, %v1263, %v1257
        %vm1267 = vcmask 195584
        %v1269 = vsel %vm1267, %v1266, %v1260
        %v1270 = vld [vmem:[%s9] sm:$0xf]
        %v1271 = vld [vmem:[%s9 + $0x4] sm:$0xf]
        %v1272 = vld [vmem:[%s9 + $0x8] sm:$0xf]
        %v1273 = vld [vmem:[%s9 + $0xc] sm:$0xf]
        %v1278 = vunpack.c.l.b16 %v1270
        %v1279 = vunpack.c.l.b16 %v1271
        %v1280 = vunpack.c.l.b16 %v1272
        %v1281 = vunpack.c.l.b16 %v1273
        %v1282 = vpack.c.b16 %v1279, %v1278
        %v1283 = vpack.c.b16 %v1281, %v1280
        %v1286 = vsel %vm566, %v1269, 0
        %1288 = vmatprep.subr.bf16.mxu0 0
        %1289 = vmatpush1.bf16.msra.mxu0 %v1282
        %1290 = vmatprep.subr.bf16.mxu0 0
        %1291 = vmatpush1.bf16.msra.mxu0 %v1283
        %1292 = vmatprep.subr.bf16.mxu0 0
        %1293 = vmatpush1.bf16.msra.mxu0 0
        %1294 = vmatprep.subr.bf16.mxu0 0
        %1295 = vmatpush1.bf16.msra.mxu0 0
        %1296 = vmatprep.subr.bf16.mxu0 0
        %1297 = vmatpush1.bf16.msra.mxu0 0
        %1298 = vmatprep.subr.bf16.mxu0 0
        %1299 = vmatpush1.bf16.msra.mxu0 0
        %1300 = vmatprep.subr.bf16.mxu0 0
        %1301 = vmatpush1.bf16.msra.mxu0 0
        %1302 = vmatprep.subr.bf16.mxu0 0
        %1303 = vmatpush1.bf16.msra.mxu0 0
        %1304 = vmatprep.subr.bf16.mxu0 0
        %1305 = vmatpush1.bf16.msra.mxu0 0
        %1306 = vmatprep.subr.bf16.mxu0 0
        %1307 = vmatpush1.bf16.msra.mxu0 0
        %1308 = vmatprep.subr.bf16.mxu0 0
        %1309 = vmatpush1.bf16.msra.mxu0 0
        %1310 = vmatprep.subr.bf16.mxu0 0
        %1311 = vmatpush1.bf16.msra.mxu0 0
        %1312 = vmatprep.subr.bf16.mxu0 0
        %1313 = vmatpush1.bf16.msra.mxu0 0
        %1314 = vmatprep.subr.bf16.mxu0 0
        %1315 = vmatpush1.bf16.msra.mxu0 0
        %1316 = vmatprep.subr.bf16.mxu0 0
        %1317 = vmatpush1.bf16.msra.mxu0 0
        %1318 = vmatprep.subr.bf16.mxu0 0
        %1319 = vmatpush1.bf16.msra.mxu0 0
        %1320 = vmatprep.mubr.bf16.mxu0 0
        %1321 = vmatmul.mubr.bf16.gmra.mrb[0].mxu0 %v1286
        %v1322 = vpop.f32.mrb[0].mxu0
        %v1323 = vadd.f32 %v562, %v1322
        %v1324 = vpop.f32.mrb[0].mxu0
        %v1325 = vpop.f32.mrb[0].mxu0
        %v1326 = vpop.f32.mrb[0].mxu0
        %1327 = vdwg.mxu0
        %v1328 = vld [vmem:[%s10] sm:$0x1]
        %v1329 = vld [vmem:[%s11] sm:$0x1]
        %v1330 = vsel %vm566, %v1323, 0.0
        %1331 = vadd.xlane.f32.xlu0 %v1330
        %v1332 = vpop.xlane.xlu0 %1331
        %v1333 = vmul.f32 %v1332, %v570
        %v1334 = vmul.f32 %v1323, %v1323
        %v1335 = vsel %vm566, %v1334, 0.0
        %1336 = vadd.xlane.f32.xlu0 %v1335
        %v1337 = vpop.xlane.xlu0 %1336
        %v1338 = vmul.f32 %v1337, %v570
        %v1339 = vmul.f32 %v1333, %v1333
        %v1340 = vsub.f32 %v1338, %v1339
        %v1341 = vmax.f32 %v1340, 0.0
        %v1342 = vsub.f32 %v1323, %v1333
        %v1343 = vadd.f32 %v1341, 1e-05
        %v1344 = vrsqrt.pop %v1343
        %v1345 = vmul.f32 %v1342, %v1344
        %v1347 = vlaneseq
        %v1348 = vshrl.u32 %v1347, 7
        %v1349 = vsub.s32 0, %v1348
        %v1350 = vrot.slane %v1328, %v1349
        %v1352 = vmul.f32 %v1345, %v1350
        %v1354 = vlaneseq
        %v1355 = vshrl.u32 %v1354, 7
        %v1356 = vsub.s32 0, %v1355
        %v1357 = vrot.slane %v1329, %v1356
        %v1359 = vadd.f32 %v1352, %v1357
        %v1360 = vxor.u32 %v1359, 2147483648
        %v1361 = vmul.f32 %v1360, 1.442695
        %v1362 = vpow.pop %v1361
        %v1363 = vadd.f32 %v1362, 1.0
        %v1364 = vrcp.pop %v1363
        %v1365 = vmul.f32 1.0, %v1364
        %v1366 = vmul.f32 %v1359, %v1365
        %v1367 = vpack.c.bf16 %v1366, %v1366
        %v1368 = vld [vmem:[#allocation13] sm:$0xf]
        %v1369 = vld [vmem:[#allocation13 + $0x4] sm:$0xf]
        %v1370 = vld [vmem:[#allocation13 + $0x8] sm:$0xf]
        %v1371 = vld [vmem:[#allocation13 + $0xc] sm:$0xf]
        %v1376 = vunpack.c.l.b16 %v1368
        %v1377 = vunpack.c.l.b16 %v1369
        %v1378 = vunpack.c.l.b16 %v1370
        %v1379 = vunpack.c.l.b16 %v1371
        %v1380 = vpack.c.b16 %v1377, %v1376
        %v1381 = vpack.c.b16 %v1379, %v1378
        %v1385 = vsel %vm566, %v1367, 0
        %1387 = vmatprep.subr.bf16.mxu0 0
        %1388 = vmatpush1.bf16.msra.mxu0 %v1380
        %1389 = vmatprep.subr.bf16.mxu0 0
        %1390 = vmatpush1.bf16.msra.mxu0 %v1381
        %1391 = vmatprep.subr.bf16.mxu0 0
        %1392 = vmatpush1.bf16.msra.mxu0 0
        %1393 = vmatprep.subr.bf16.mxu0 0
        %1394 = vmatpush1.bf16.msra.mxu0 0
        %1395 = vmatprep.subr.bf16.mxu0 0
        %1396 = vmatpush1.bf16.msra.mxu0 0
        %1397 = vmatprep.subr.bf16.mxu0 0
        %1398 = vmatpush1.bf16.msra.mxu0 0
        %1399 = vmatprep.subr.bf16.mxu0 0
        %1400 = vmatpush1.bf16.msra.mxu0 0
        %1401 = vmatprep.subr.bf16.mxu0 0
        %1402 = vmatpush1.bf16.msra.mxu0 0
        %1403 = vmatprep.subr.bf16.mxu0 0
        %1404 = vmatpush1.bf16.msra.mxu0 0
        %1405 = vmatprep.subr.bf16.mxu0 0
        %1406 = vmatpush1.bf16.msra.mxu0 0
        %1407 = vmatprep.subr.bf16.mxu0 0
        %1408 = vmatpush1.bf16.msra.mxu0 0
        %1409 = vmatprep.subr.bf16.mxu0 0
        %1410 = vmatpush1.bf16.msra.mxu0 0
        %1411 = vmatprep.subr.bf16.mxu0 0
        %1412 = vmatpush1.bf16.msra.mxu0 0
        %1413 = vmatprep.subr.bf16.mxu0 0
        %1414 = vmatpush1.bf16.msra.mxu0 0
        %1415 = vmatprep.subr.bf16.mxu0 0
        %1416 = vmatpush1.bf16.msra.mxu0 0
        %1417 = vmatprep.subr.bf16.mxu0 0
        %1418 = vmatpush1.bf16.msra.mxu0 0
        %1419 = vmatprep.mubr.bf16.mxu0 0
        %1420 = vmatmul.mubr.bf16.gmra.mrb[0].mxu0 %v1385
        %v1421 = vpop.f32.mrb[0].mxu0
        %v1422 = vadd.f32 %v1323, %v1421
        %v1423 = vpop.f32.mrb[0].mxu0
        %v1424 = vpop.f32.mrb[0].mxu0
        %v1425 = vpop.f32.mrb[0].mxu0
        %1426 = vdwg.mxu0
        %1427 = vst.msk [vmem:[%s560] sm:$0xff] %vm566, %v1422
        %s1428 = sand.u32 %s326, 1
        %s1429 = scalar_lea.sflag [#allocation4], %s1428
        %s1430 = sand.u32 %s326, 1
        %s1431 = smul.addr %s1430, 8
        %s1432 = scalar_lea.vmem [#allocation14], %s1431
        // Predicated region
        $region101: #{tpu_custom_call.1} parent=71 // pred_check
          %p1433 = pneg %p336
        $region102: #{tpu_custom_call.1} parent=71 // pred_check_branch
          %1435 = sbr.rel (%p1433) target = $region104
        $region103: #{tpu_custom_call.1} parent=71 // pred_region
          %s1437 = ssub.s32 128, 128
          %1438 = vsyncadd %s1429, %s1437
          %s1439 = smul.addr %s35, 128
          %s1440 = scalar_lea.hbm %s13, %s1439
          %s1442 = sshll.u32 %s1432, 4
          %s1443 = int_to_ptr.vmem [resolvable:$true] %s1442
          %1445 = dma.vmem_to_hbm [thread:$0]  %s1443, 128, %s1440, %s1429
        $region104: #{tpu_custom_call.1} parent=71 // pred_fallthru
          _
      $region72: #{tpu_custom_call.1} parent=5 // pred_fallthru
        _
      %p1446 = scmp.le.s32.totalorder 2, %s30
      // Predicated region
      $region105: #{tpu_custom_call.1} parent=5 // pred_check
        %p1447 = pneg %p1446
      $region106: #{tpu_custom_call.1} parent=5 // pred_check_branch
        %1449 = sbr.rel (%p1447) target = $region108
      $region107: #{tpu_custom_call.1} parent=5 // pred_region
        %s1450 = ssub.s32 %s30, 2
        // Predicated region
        $region109: #{tpu_custom_call.1} parent=107 // pred_check
          %p1451 = pneg %p342
        $region110: #{tpu_custom_call.1} parent=107 // pred_check_branch
          %1453 = sbr.rel (%p1451) target = $region112
        $region111: #{tpu_custom_call.1} parent=107 // pred_region
          %s1454 = sand.u32 %s327, 1
          %s1455 = scalar_lea.sflag [#allocation4], %s1454
          %s1456 = sand.u32 %s327, 1
          %s1457 = smul.addr %s1456, 8
          %s1458 = scalar_lea.vmem [#allocation14], %s1457
          %1459 = dma.done %s1455, 128
        $region112: #{tpu_custom_call.1} parent=107 // pred_fallthru
          _
      $region108: #{tpu_custom_call.1} parent=5 // pred_fallthru
        _
    $region6: #{tpu_custom_call.1} parent=1 // loop_footer
      %s34 = sadd.s32 1, %s30
    $region7: #{tpu_custom_call.1} parent=1 // loop_footer_branch
      %29 = sbr.rel target = $region3
    $region8: #{tpu_custom_call.1} parent=1 // loop_exit
      _
    %1460 = vsyncpa [#allocation3], 1
    %s1461 = scalar_lea.sflag [#allocation3], 1
    %1462 = vsyncpa %s1461, 1
    %1463 = vsyncpa [#allocation6], 1
    %s1464 = scalar_lea.sflag [#allocation6], 1
    %1465 = vsyncpa %s1464, 1
    %1466 = vsyncpa [#allocation9], 1
    %1467 = vsyncpa [#allocation12], 1
    %1468 = vsyncpa [#allocation4], 1
    %s1469 = scalar_lea.sflag [#allocation4], 1
    %1470 = vsyncpa %s1469, 1

</llo_original>
